<compile_context>
chip_gen: v6e
topology: v6e:2x2x1
jax: 0.10.0
libtpu: 0.0.40
codegen_flags: <defaults>
</compile_context>

<pallas_src>
import jax
import jax.numpy as jnp
from jax import lax
from jax.experimental import pallas as pl
from jax.experimental.pallas import tpu as pltpu


def _bilstm_tag_kernel(xcat_ref, wih_ref, whh_ref, b_ref, h0_ref, c0_ref,
                       wtag_ref, btag_ref, out_ref, xg_scr, h_scr):
    """Fused bidirectional LSTM (interleaved directions) + hidden2tag linear."""
    T, B, _ = xcat_ref.shape
    H2 = h0_ref.shape[1]          # 2H (fwd hidden in lanes 0:H, bwd in H:2H)
    H = H2 // 2
    G = wih_ref.shape[1]          # 8H fused gate width
    HS = 3 * H2                   # 6H contiguous sigmoid columns

    # One fused input projection for all timesteps & both directions, biases folded.
    xg_scr[...] = (jnp.dot(xcat_ref[...].reshape(T * B, xcat_ref.shape[2]),
                           wih_ref[...], preferred_element_type=jnp.float32)
                   + b_ref[...])

    whh = whh_ref[...]            # [2H, 8H] block-structured recurrent weight
    h = h0_ref[...]               # [B, 2H]
    c = c0_ref[...]               # [B, 2H]

    # Fully unrolled interleaved recurrence: one MXU dot + 3 EUP pushes per step
    # handle the forward direction at time s AND the backward direction at T-1-s.
    for s in range(T):
        xrow = s * B
        gates = xg_scr[xrow:xrow + B, :] + jnp.dot(
            h, whh, preferred_element_type=jnp.float32)        # [B, 8H]
        sig = jax.nn.sigmoid(gates[:, 0:HS])                    # i|f|o, both dirs
        g_g = jnp.tanh(gates[:, HS:G])                          # g, both dirs
        i_g = sig[:, 0:H2]
        f_g = sig[:, H2:2 * H2]
        o_g = sig[:, 2 * H2:3 * H2]
        c = f_g * c + i_g * g_g
        h = o_g * jnp.tanh(c)
        # Forward hidden belongs at time s, backward hidden at time T-1-s.
        h_scr[xrow:xrow + B, 0:H] = h[:, 0:H]
        rrow = (T - 1 - s) * B
        h_scr[rrow:rrow + B, H:H2] = h[:, H:H2]

    # hidden2tag: single [T*B, 2H] @ [2H, Cpad] dot, lane-dense output slab.
    out_ref[...] = (jnp.dot(h_scr[...], wtag_ref[...],
                            preferred_element_type=jnp.float32) + btag_ref[...])


def _fuse_gate_weights(w_f, w_b, H):
    """[K,4H] (i,f,g,o) per direction -> [2K,8H] with columns (i_f,i_b,f_f,f_b,o_f,o_b,g_f,g_b)."""
    K = w_f.shape[0]
    z = jnp.zeros((K, H), w_f.dtype)
    i_f, f_f, g_f, o_f = (w_f[:, 0:H], w_f[:, H:2 * H],
                          w_f[:, 2 * H:3 * H], w_f[:, 3 * H:4 * H])
    i_b, f_b, g_b, o_b = (w_b[:, 0:H], w_b[:, H:2 * H],
                          w_b[:, 2 * H:3 * H], w_b[:, 3 * H:4 * H])
    top = jnp.concatenate([i_f, z, f_f, z, o_f, z, g_f, z], axis=1)   # fwd rows
    bot = jnp.concatenate([z, i_b, z, f_b, z, o_b, z, g_b], axis=1)   # bwd rows
    return jnp.concatenate([top, bot], axis=0)


def _fuse_gate_bias(b_f, b_b, H):
    bi_f, bf_f, bg_f, bo_f = (b_f[:, 0:H], b_f[:, H:2 * H],
                              b_f[:, 2 * H:3 * H], b_f[:, 3 * H:4 * H])
    bi_b, bf_b, bg_b, bo_b = (b_b[:, 0:H], b_b[:, H:2 * H],
                              b_b[:, 2 * H:3 * H], b_b[:, 3 * H:4 * H])
    return jnp.concatenate([bi_f, bi_b, bf_f, bf_b, bo_f, bo_b, bg_f, bg_b], axis=1)


@jax.jit
def lstm_emissions(x, wih_f, whh_f, b_f, wih_b, whh_b, b_b, h0, c0, wtag, btag):
    B, T, D = x.shape
    H = whh_f.shape[0]
    C = wtag.shape[1]
    CP = 128                                   # lane-dense padded tag width

    # ---- wrapper-side repacking (layout plumbing, outside the kernel) ----
    x_tbd = jnp.transpose(x, (1, 0, 2))                            # [T, B, D]
    x_cat = jnp.concatenate([x_tbd, x_tbd[::-1]], axis=-1)         # [T, B, 2D]
    wih_c = _fuse_gate_weights(wih_f, wih_b, H)                    # [2D, 8H]
    whh_c = _fuse_gate_weights(whh_f, whh_b, H)                    # [2H, 8H]
    b_c = _fuse_gate_bias(b_f, b_b, H)                             # [1, 8H]
    h0c = jnp.concatenate([h0[0], h0[1]], axis=-1)                 # [B, 2H]
    c0c = jnp.concatenate([c0[0], c0[1]], axis=-1)                 # [B, 2H]
    wtag_p = jnp.pad(wtag, ((0, 0), (0, CP - C)))                  # [2H, 128]
    btag_p = jnp.pad(btag, ((0, 0), (0, CP - C)))                  # [1, 128]

    vmem = pl.BlockSpec(memory_space=pltpu.MemorySpace.VMEM)
    emis = pl.pallas_call(
        _bilstm_tag_kernel,
        out_shape=jax.ShapeDtypeStruct((T * B, CP), jnp.float32),
        in_specs=[vmem] * 8,
        out_specs=vmem,
        scratch_shapes=[pltpu.VMEM((T * B, 8 * H), jnp.float32),   # fused input proj
                        pltpu.VMEM((T * B, 2 * H), jnp.float32)],  # bi-dir hiddens
    )(x_cat, wih_c, whh_c, b_c, h0c, c0c, wtag_p, btag_p)

    # [T*B, CP] -> [B, T, C]
    return emis.reshape(T, B, CP).transpose(1, 0, 2)[:, :, :C]


def crf_decode(emissions, mask, start_trans, trans, end_trans):
    """Viterbi decode (torchcrf semantics, batch_first), returns padded [B, T] tags.

    Kept in plain JAX glue: num_tags (5) is far below the 128-lane vreg width,
    so there is no useful Pallas tiling for this step.
    """
    B, T, C = emissions.shape
    mask = mask.astype(bool)
    score = start_trans[None, :] + emissions[:, 0]                    # [B, C]

    def fwd(score, xs):
        emit_t, mask_t = xs                                           # [B,C], [B]
        nxt = score[:, :, None] + trans[None] + emit_t[:, None, :]    # [B,C,C]
        best = jnp.max(nxt, axis=1)
        idx = jnp.argmax(nxt, axis=1)                                 # [B, C]
        score = jnp.where(mask_t[:, None], best, score)
        return score, idx

    em_t = jnp.swapaxes(emissions, 0, 1)                              # [T, B, C]
    mk_t = jnp.swapaxes(mask, 0, 1)                                   # [T, B]
    score, history = lax.scan(fwd, score, (em_t[1:], mk_t[1:]))       # [T-1, B, C]
    score = score + end_trans[None, :]

    seq_end = jnp.sum(mask, axis=1) - 1                               # [B]
    best_last = jnp.argmax(score, axis=1)                             # [B]
    batch_idx = jnp.arange(B)

    def back(nxt, t):
        hist_t = history[jnp.minimum(t, T - 2)]                       # [B, C]
        from_hist = hist_t[batch_idx, nxt]
        tag_t = jnp.where(t == seq_end, best_last,
                          jnp.where(t < seq_end, from_hist, 0))
        nxt_new = jnp.where(t <= seq_end, tag_t, nxt)
        return nxt_new, tag_t

    _, tags_rev = lax.scan(back, best_last, jnp.arange(T - 1, -1, -1))
    tags = jnp.flip(tags_rev, axis=0).T                               # [B, T], 0-padded
    return tags


if __name__ == "__main__":
    # configs: pretrained_size=32, hidden_size=32, num_layers=1,
    #          bidirectional=True (num_directions=2), num_class=5.
    B, T, D, H, C = 2, 8, 32, 32, 5
    key = jax.random.PRNGKey(0)
    keys = jax.random.split(key, 12)

    k_lstm = 1.0 / jnp.sqrt(H)
    k_lin = 1.0 / jnp.sqrt(2 * H)

    def u(k, shape, bound):
        return jax.random.uniform(k, shape, jnp.float32, -bound, bound)

    # LSTM weights (pre-transposed), gate order (i, f, g, o); b = b_ih + b_hh folded.
    wih_f = u(keys[0], (D, 4 * H), k_lstm)
    whh_f = u(keys[1], (H, 4 * H), k_lstm)
    b_f = u(keys[2], (1, 4 * H), k_lstm)
    wih_b = u(keys[3], (D, 4 * H), k_lstm)
    whh_b = u(keys[4], (H, 4 * H), k_lstm)
    b_b = u(keys[5], (1, 4 * H), k_lstm)
    # hidden2tag Linear (weight^T, bias).
    wtag = u(keys[6], (2 * H, C), k_lin)
    btag = u(keys[7], (1, C), k_lin)
    # CRF parameters (torchcrf init: uniform(-0.1, 0.1)).
    start_trans = u(keys[8], (C,), 0.1)
    trans = u(keys[9], (C, C), 0.1)
    end_trans = u(keys[10], (C,), 0.1)

    # _init_hidden: torch.randn(num_layers * num_directions, B, H)
    h0 = jax.random.normal(jax.random.fold_in(key, 100), (2, B, H), jnp.float32)
    c0 = jax.random.normal(jax.random.fold_in(key, 101), (2, B, H), jnp.float32)

    # Inputs: post-remove_cls padded ESM embeddings + per-position mask.
    lengths = jnp.array([T, T - 3], dtype=jnp.int32)
    mask = (jnp.arange(T)[None, :] < lengths[:, None]).astype(jnp.int32)  # [B, T]
    x = jax.random.normal(keys[11], (B, T, D), jnp.float32) * mask[..., None]

    emissions = lstm_emissions(x, wih_f, whh_f, b_f, wih_b, whh_b, b_b,
                               h0, c0, wtag, btag)
    tags = crf_decode(emissions, mask, start_trans, trans, end_trans)
    jax.block_until_ready((emissions, tags))
    print("KERNEL_OK")
</pallas_src>

<mosaic_0001>
module attributes {stable_mosaic.version = 11 : i64} {
  func.func @_bilstm_tag_kernel(%arg0: memref<8x2x64xf32, #tpu.memory_space<vmem>>, %arg1: memref<64x256xf32, #tpu.memory_space<vmem>>, %arg2: memref<64x256xf32, #tpu.memory_space<vmem>>, %arg3: memref<1x256xf32, #tpu.memory_space<vmem>>, %arg4: memref<2x64xf32, #tpu.memory_space<vmem>>, %arg5: memref<2x64xf32, #tpu.memory_space<vmem>>, %arg6: memref<64x128xf32, #tpu.memory_space<vmem>>, %arg7: memref<1x128xf32, #tpu.memory_space<vmem>>, %arg8: memref<16x128xf32, #tpu.memory_space<vmem>>, %arg9: memref<16x256xf32, #tpu.memory_space<vmem>>, %arg10: memref<16x64xf32, #tpu.memory_space<vmem>>) attributes {dimension_semantics = [], scalar_prefetch = 0 : i64, scratch_operands = 2 : i64, tpu.core_type = #tpu.core_type<tc>} {
    %c0 = arith.constant 0 : index
    %c0_0 = arith.constant 0 : index
    %c0_1 = arith.constant 0 : index
    %0 = vector.load %arg0[%c0, %c0_0, %c0_1] : memref<8x2x64xf32, #tpu.memory_space<vmem>>, vector<8x2x64xf32>
    %1 = vector.shape_cast %0 : vector<8x2x64xf32> to vector<16x64xf32>
    %c0_2 = arith.constant 0 : index
    %c0_3 = arith.constant 0 : index
    %2 = vector.load %arg1[%c0_2, %c0_3] : memref<64x256xf32, #tpu.memory_space<vmem>>, vector<64x256xf32>
    %cst = arith.constant dense<0.000000e+00> : vector<16x256xf32>
    %3 = tpu.matmul %1, %2, %cst {dimension_numbers = #tpu.dot_dimension_numbers<[1], [0], [0], [1], [0, 0, 1, 1], [], []>} : vector<16x64xf32>, vector<64x256xf32>, vector<16x256xf32> -> vector<16x256xf32>
    %c0_4 = arith.constant 0 : index
    %c0_5 = arith.constant 0 : index
    %4 = vector.load %arg3[%c0_4, %c0_5] : memref<1x256xf32, #tpu.memory_space<vmem>>, vector<1x256xf32>
    %5 = vector.broadcast %4 : vector<1x256xf32> to vector<16x256xf32>
    %6 = arith.addf %3, %5 : vector<16x256xf32>
    %c0_6 = arith.constant 0 : index
    %c0_7 = arith.constant 0 : index
    %7 = vector.load %arg9[%c0_6, %c0_7] : memref<16x256xf32, #tpu.memory_space<vmem>>, vector<16x256xf32>
    tpu.vector_store %arg9[%c0_6, %c0_7], %6 {strides = array<i32>} : memref<16x256xf32, #tpu.memory_space<vmem>>, vector<16x256xf32>,
    %c0_8 = arith.constant 0 : index
    %c0_9 = arith.constant 0 : index
    %8 = vector.load %arg2[%c0_8, %c0_9] : memref<64x256xf32, #tpu.memory_space<vmem>>, vector<64x256xf32>
    %c0_10 = arith.constant 0 : index
    %c0_11 = arith.constant 0 : index
    %9 = vector.load %arg4[%c0_10, %c0_11] : memref<2x64xf32, #tpu.memory_space<vmem>>, vector<2x64xf32>
    %c0_12 = arith.constant 0 : index
    %c0_13 = arith.constant 0 : index
    %10 = vector.load %arg5[%c0_12, %c0_13] : memref<2x64xf32, #tpu.memory_space<vmem>>, vector<2x64xf32>
    %c0_14 = arith.constant 0 : index
    %c0_15 = arith.constant 0 : index
    %11 = vector.load %arg9[%c0_14, %c0_15] : memref<16x256xf32, #tpu.memory_space<vmem>>, vector<2x256xf32>
    %cst_16 = arith.constant dense<0.000000e+00> : vector<2x256xf32>
    %12 = tpu.matmul %9, %8, %cst_16 {dimension_numbers = #tpu.dot_dimension_numbers<[1], [0], [0], [1], [0, 0, 1, 1], [], []>} : vector<2x64xf32>, vector<64x256xf32>, vector<2x256xf32> -> vector<2x256xf32>
    %13 = arith.addf %11, %12 : vector<2x256xf32>
    %14 = vector.extract_strided_slice %13 {offsets = [0, 0], sizes = [2, 192], strides = [1, 1]} : vector<2x256xf32> to vector<2x192xf32>
    %15 = arith.negf %14 : vector<2x192xf32>
    %16 = math.exp %15 : vector<2x192xf32>
    %cst_17 = arith.constant 1.000000e+00 : f32
    %17 = vector.broadcast %cst_17 : f32 to vector<2x192xf32>
    %18 = arith.addf %17, %16 : vector<2x192xf32>
    %19 = arith.divf %17, %18 : vector<2x192xf32>
    %20 = vector.extract_strided_slice %13 {offsets = [0, 192], sizes = [2, 64], strides = [1, 1]} : vector<2x256xf32> to vector<2x64xf32>
    %21 = math.tanh %20 : vector<2x64xf32>
    %22 = vector.extract_strided_slice %19 {offsets = [0, 0], sizes = [2, 64], strides = [1, 1]} : vector<2x192xf32> to vector<2x64xf32>
    %23 = vector.extract_strided_slice %19 {offsets = [0, 64], sizes = [2, 64], strides = [1, 1]} : vector<2x192xf32> to vector<2x64xf32>
    %24 = vector.extract_strided_slice %19 {offsets = [0, 128], sizes = [2, 64], strides = [1, 1]} : vector<2x192xf32> to vector<2x64xf32>
    %25 = arith.mulf %23, %10 : vector<2x64xf32>
    %26 = arith.mulf %22, %21 : vector<2x64xf32>
    %27 = arith.addf %25, %26 : vector<2x64xf32>
    %28 = math.tanh %27 : vector<2x64xf32>
    %29 = arith.mulf %24, %28 : vector<2x64xf32>
    %30 = vector.extract_strided_slice %29 {offsets = [0, 0], sizes = [2, 32], strides = [1, 1]} : vector<2x64xf32> to vector<2x32xf32>
    %c0_18 = arith.constant 0 : index
    %c0_19 = arith.constant 0 : index
    %31 = vector.load %arg10[%c0_18, %c0_19] : memref<16x64xf32, #tpu.memory_space<vmem>>, vector<2x32xf32>
    tpu.vector_store %arg10[%c0_18, %c0_19], %30 {strides = array<i32>} : memref<16x64xf32, #tpu.memory_space<vmem>>, vector<2x32xf32>,
    %32 = vector.extract_strided_slice %29 {offsets = [0, 32], sizes = [2, 32], strides = [1, 1]} : vector<2x64xf32> to vector<2x32xf32>
    %c14 = arith.constant 14 : index
    %c32 = arith.constant 32 : index
    %33 = vector.load %arg10[%c14, %c32] : memref<16x64xf32, #tpu.memory_space<vmem>>, vector<2x32xf32>
    tpu.vector_store %arg10[%c14, %c32], %32 {strides = array<i32>} : memref<16x64xf32, #tpu.memory_space<vmem>>, vector<2x32xf32>,
    %c2 = arith.constant 2 : index
    %c0_20 = arith.constant 0 : index
    %34 = vector.load %arg9[%c2, %c0_20] : memref<16x256xf32, #tpu.memory_space<vmem>>, vector<2x256xf32>
    %cst_21 = arith.constant dense<0.000000e+00> : vector<2x256xf32>
    %35 = tpu.matmul %29, %8, %cst_21 {dimension_numbers = #tpu.dot_dimension_numbers<[1], [0], [0], [1], [0, 0, 1, 1], [], []>} : vector<2x64xf32>, vector<64x256xf32>, vector<2x256xf32> -> vector<2x256xf32>
    %36 = arith.addf %34, %35 : vector<2x256xf32>
    %37 = vector.extract_strided_slice %36 {offsets = [0, 0], sizes = [2, 192], strides = [1, 1]} : vector<2x256xf32> to vector<2x192xf32>
    %38 = arith.negf %37 : vector<2x192xf32>
    %39 = math.exp %38 : vector<2x192xf32>
    %cst_22 = arith.constant 1.000000e+00 : f32
    %40 = vector.broadcast %cst_22 : f32 to vector<2x192xf32>
    %41 = arith.addf %40, %39 : vector<2x192xf32>
    %42 = arith.divf %40, %41 : vector<2x192xf32>
    %43 = vector.extract_strided_slice %36 {offsets = [0, 192], sizes = [2, 64], strides = [1, 1]} : vector<2x256xf32> to vector<2x64xf32>
    %44 = math.tanh %43 : vector<2x64xf32>
    %45 = vector.extract_strided_slice %42 {offsets = [0, 0], sizes = [2, 64], strides = [1, 1]} : vector<2x192xf32> to vector<2x64xf32>
    %46 = vector.extract_strided_slice %42 {offsets = [0, 64], sizes = [2, 64], strides = [1, 1]} : vector<2x192xf32> to vector<2x64xf32>
    %47 = vector.extract_strided_slice %42 {offsets = [0, 128], sizes = [2, 64], strides = [1, 1]} : vector<2x192xf32> to vector<2x64xf32>
    %48 = arith.mulf %46, %27 : vector<2x64xf32>
    %49 = arith.mulf %45, %44 : vector<2x64xf32>
    %50 = arith.addf %48, %49 : vector<2x64xf32>
    %51 = math.tanh %50 : vector<2x64xf32>
    %52 = arith.mulf %47, %51 : vector<2x64xf32>
    %53 = vector.extract_strided_slice %52 {offsets = [0, 0], sizes = [2, 32], strides = [1, 1]} : vector<2x64xf32> to vector<2x32xf32>
    %c2_23 = arith.constant 2 : index
    %c0_24 = arith.constant 0 : index
    %54 = vector.load %arg10[%c2_23, %c0_24] : memref<16x64xf32, #tpu.memory_space<vmem>>, vector<2x32xf32>
    tpu.vector_store %arg10[%c2_23, %c0_24], %53 {strides = array<i32>} : memref<16x64xf32, #tpu.memory_space<vmem>>, vector<2x32xf32>,
    %55 = vector.extract_strided_slice %52 {offsets = [0, 32], sizes = [2, 32], strides = [1, 1]} : vector<2x64xf32> to vector<2x32xf32>
    %c12 = arith.constant 12 : index
    %c32_25 = arith.constant 32 : index
    %56 = vector.load %arg10[%c12, %c32_25] : memref<16x64xf32, #tpu.memory_space<vmem>>, vector<2x32xf32>
    tpu.vector_store %arg10[%c12, %c32_25], %55 {strides = array<i32>} : memref<16x64xf32, #tpu.memory_space<vmem>>, vector<2x32xf32>,
    %c4 = arith.constant 4 : index
    %c0_26 = arith.constant 0 : index
    %57 = vector.load %arg9[%c4, %c0_26] : memref<16x256xf32, #tpu.memory_space<vmem>>, vector<2x256xf32>
    %cst_27 = arith.constant dense<0.000000e+00> : vector<2x256xf32>
    %58 = tpu.matmul %52, %8, %cst_27 {dimension_numbers = #tpu.dot_dimension_numbers<[1], [0], [0], [1], [0, 0, 1, 1], [], []>} : vector<2x64xf32>, vector<64x256xf32>, vector<2x256xf32> -> vector<2x256xf32>
    %59 = arith.addf %57, %58 : vector<2x256xf32>
    %60 = vector.extract_strided_slice %59 {offsets = [0, 0], sizes = [2, 192], strides = [1, 1]} : vector<2x256xf32> to vector<2x192xf32>
    %61 = arith.negf %60 : vector<2x192xf32>
    %62 = math.exp %61 : vector<2x192xf32>
    %cst_28 = arith.constant 1.000000e+00 : f32
    %63 = vector.broadcast %cst_28 : f32 to vector<2x192xf32>
    %64 = arith.addf %63, %62 : vector<2x192xf32>
    %65 = arith.divf %63, %64 : vector<2x192xf32>
    %66 = vector.extract_strided_slice %59 {offsets = [0, 192], sizes = [2, 64], strides = [1, 1]} : vector<2x256xf32> to vector<2x64xf32>
    %67 = math.tanh %66 : vector<2x64xf32>
    %68 = vector.extract_strided_slice %65 {offsets = [0, 0], sizes = [2, 64], strides = [1, 1]} : vector<2x192xf32> to vector<2x64xf32>
    %69 = vector.extract_strided_slice %65 {offsets = [0, 64], sizes = [2, 64], strides = [1, 1]} : vector<2x192xf32> to vector<2x64xf32>
    %70 = vector.extract_strided_slice %65 {offsets = [0, 128], sizes = [2, 64], strides = [1, 1]} : vector<2x192xf32> to vector<2x64xf32>
    %71 = arith.mulf %69, %50 : vector<2x64xf32>
    %72 = arith.mulf %68, %67 : vector<2x64xf32>
    %73 = arith.addf %71, %72 : vector<2x64xf32>
    %74 = math.tanh %73 : vector<2x64xf32>
    %75 = arith.mulf %70, %74 : vector<2x64xf32>
    %76 = vector.extract_strided_slice %75 {offsets = [0, 0], sizes = [2, 32], strides = [1, 1]} : vector<2x64xf32> to vector<2x32xf32>
    %c4_29 = arith.constant 4 : index
    %c0_30 = arith.constant 0 : index
    %77 = vector.load %arg10[%c4_29, %c0_30] : memref<16x64xf32, #tpu.memory_space<vmem>>, vector<2x32xf32>
    tpu.vector_store %arg10[%c4_29, %c0_30], %76 {strides = array<i32>} : memref<16x64xf32, #tpu.memory_space<vmem>>, vector<2x32xf32>,
    %78 = vector.extract_strided_slice %75 {offsets = [0, 32], sizes = [2, 32], strides = [1, 1]} : vector<2x64xf32> to vector<2x32xf32>
    %c10 = arith.constant 10 : index
    %c32_31 = arith.constant 32 : index
    %79 = vector.load %arg10[%c10, %c32_31] : memref<16x64xf32, #tpu.memory_space<vmem>>, vector<2x32xf32>
    tpu.vector_store %arg10[%c10, %c32_31], %78 {strides = array<i32>} : memref<16x64xf32, #tpu.memory_space<vmem>>, vector<2x32xf32>,
    %c6 = arith.constant 6 : index
    %c0_32 = arith.constant 0 : index
    %80 = vector.load %arg9[%c6, %c0_32] : memref<16x256xf32, #tpu.memory_space<vmem>>, vector<2x256xf32>
    %cst_33 = arith.constant dense<0.000000e+00> : vector<2x256xf32>
    %81 = tpu.matmul %75, %8, %cst_33 {dimension_numbers = #tpu.dot_dimension_numbers<[1], [0], [0], [1], [0, 0, 1, 1], [], []>} : vector<2x64xf32>, vector<64x256xf32>, vector<2x256xf32> -> vector<2x256xf32>
    %82 = arith.addf %80, %81 : vector<2x256xf32>
    %83 = vector.extract_strided_slice %82 {offsets = [0, 0], sizes = [2, 192], strides = [1, 1]} : vector<2x256xf32> to vector<2x192xf32>
    %84 = arith.negf %83 : vector<2x192xf32>
    %85 = math.exp %84 : vector<2x192xf32>
    %cst_34 = arith.constant 1.000000e+00 : f32
    %86 = vector.broadcast %cst_34 : f32 to vector<2x192xf32>
    %87 = arith.addf %86, %85 : vector<2x192xf32>
    %88 = arith.divf %86, %87 : vector<2x192xf32>
    %89 = vector.extract_strided_slice %82 {offsets = [0, 192], sizes = [2, 64], strides = [1, 1]} : vector<2x256xf32> to vector<2x64xf32>
    %90 = math.tanh %89 : vector<2x64xf32>
    %91 = vector.extract_strided_slice %88 {offsets = [0, 0], sizes = [2, 64], strides = [1, 1]} : vector<2x192xf32> to vector<2x64xf32>
    %92 = vector.extract_strided_slice %88 {offsets = [0, 64], sizes = [2, 64], strides = [1, 1]} : vector<2x192xf32> to vector<2x64xf32>
    %93 = vector.extract_strided_slice %88 {offsets = [0, 128], sizes = [2, 64], strides = [1, 1]} : vector<2x192xf32> to vector<2x64xf32>
    %94 = arith.mulf %92, %73 : vector<2x64xf32>
    %95 = arith.mulf %91, %90 : vector<2x64xf32>
    %96 = arith.addf %94, %95 : vector<2x64xf32>
    %97 = math.tanh %96 : vector<2x64xf32>
    %98 = arith.mulf %93, %97 : vector<2x64xf32>
    %99 = vector.extract_strided_slice %98 {offsets = [0, 0], sizes = [2, 32], strides = [1, 1]} : vector<2x64xf32> to vector<2x32xf32>
    %c6_35 = arith.constant 6 : index
    %c0_36 = arith.constant 0 : index
    %100 = vector.load %arg10[%c6_35, %c0_36] : memref<16x64xf32, #tpu.memory_space<vmem>>, vector<2x32xf32>
    tpu.vector_store %arg10[%c6_35, %c0_36], %99 {strides = array<i32>} : memref<16x64xf32, #tpu.memory_space<vmem>>, vector<2x32xf32>,
    %101 = vector.extract_strided_slice %98 {offsets = [0, 32], sizes = [2, 32], strides = [1, 1]} : vector<2x64xf32> to vector<2x32xf32>
    %c8 = arith.constant 8 : index
    %c32_37 = arith.constant 32 : index
    %102 = vector.load %arg10[%c8, %c32_37] : memref<16x64xf32, #tpu.memory_space<vmem>>, vector<2x32xf32>
    tpu.vector_store %arg10[%c8, %c32_37], %101 {strides = array<i32>} : memref<16x64xf32, #tpu.memory_space<vmem>>, vector<2x32xf32>,
    %c8_38 = arith.constant 8 : index
    %c0_39 = arith.constant 0 : index
    %103 = vector.load %arg9[%c8_38, %c0_39] : memref<16x256xf32, #tpu.memory_space<vmem>>, vector<2x256xf32>
    %cst_40 = arith.constant dense<0.000000e+00> : vector<2x256xf32>
    %104 = tpu.matmul %98, %8, %cst_40 {dimension_numbers = #tpu.dot_dimension_numbers<[1], [0], [0], [1], [0, 0, 1, 1], [], []>} : vector<2x64xf32>, vector<64x256xf32>, vector<2x256xf32> -> vector<2x256xf32>
    %105 = arith.addf %103, %104 : vector<2x256xf32>
    %106 = vector.extract_strided_slice %105 {offsets = [0, 0], sizes = [2, 192], strides = [1, 1]} : vector<2x256xf32> to vector<2x192xf32>
    %107 = arith.negf %106 : vector<2x192xf32>
    %108 = math.exp %107 : vector<2x192xf32>
    %cst_41 = arith.constant 1.000000e+00 : f32
    %109 = vector.broadcast %cst_41 : f32 to vector<2x192xf32>
    %110 = arith.addf %109, %108 : vector<2x192xf32>
    %111 = arith.divf %109, %110 : vector<2x192xf32>
    %112 = vector.extract_strided_slice %105 {offsets = [0, 192], sizes = [2, 64], strides = [1, 1]} : vector<2x256xf32> to vector<2x64xf32>
    %113 = math.tanh %112 : vector<2x64xf32>
    %114 = vector.extract_strided_slice %111 {offsets = [0, 0], sizes = [2, 64], strides = [1, 1]} : vector<2x192xf32> to vector<2x64xf32>
    %115 = vector.extract_strided_slice %111 {offsets = [0, 64], sizes = [2, 64], strides = [1, 1]} : vector<2x192xf32> to vector<2x64xf32>
    %116 = vector.extract_strided_slice %111 {offsets = [0, 128], sizes = [2, 64], strides = [1, 1]} : vector<2x192xf32> to vector<2x64xf32>
    %117 = arith.mulf %115, %96 : vector<2x64xf32>
    %118 = arith.mulf %114, %113 : vector<2x64xf32>
    %119 = arith.addf %117, %118 : vector<2x64xf32>
    %120 = math.tanh %119 : vector<2x64xf32>
    %121 = arith.mulf %116, %120 : vector<2x64xf32>
    %122 = vector.extract_strided_slice %121 {offsets = [0, 0], sizes = [2, 32], strides = [1, 1]} : vector<2x64xf32> to vector<2x32xf32>
    %c8_42 = arith.constant 8 : index
    %c0_43 = arith.constant 0 : index
    %123 = vector.load %arg10[%c8_42, %c0_43] : memref<16x64xf32, #tpu.memory_space<vmem>>, vector<2x32xf32>
    tpu.vector_store %arg10[%c8_42, %c0_43], %122 {strides = array<i32>} : memref<16x64xf32, #tpu.memory_space<vmem>>, vector<2x32xf32>,
    %124 = vector.extract_strided_slice %121 {offsets = [0, 32], sizes = [2, 32], strides = [1, 1]} : vector<2x64xf32> to vector<2x32xf32>
    %c6_44 = arith.constant 6 : index
    %c32_45 = arith.constant 32 : index
    %125 = vector.load %arg10[%c6_44, %c32_45] : memref<16x64xf32, #tpu.memory_space<vmem>>, vector<2x32xf32>
    tpu.vector_store %arg10[%c6_44, %c32_45], %124 {strides = array<i32>} : memref<16x64xf32, #tpu.memory_space<vmem>>, vector<2x32xf32>,
    %c10_46 = arith.constant 10 : index
    %c0_47 = arith.constant 0 : index
    %126 = vector.load %arg9[%c10_46, %c0_47] : memref<16x256xf32, #tpu.memory_space<vmem>>, vector<2x256xf32>
    %cst_48 = arith.constant dense<0.000000e+00> : vector<2x256xf32>
    %127 = tpu.matmul %121, %8, %cst_48 {dimension_numbers = #tpu.dot_dimension_numbers<[1], [0], [0], [1], [0, 0, 1, 1], [], []>} : vector<2x64xf32>, vector<64x256xf32>, vector<2x256xf32> -> vector<2x256xf32>
    %128 = arith.addf %126, %127 : vector<2x256xf32>
    %129 = vector.extract_strided_slice %128 {offsets = [0, 0], sizes = [2, 192], strides = [1, 1]} : vector<2x256xf32> to vector<2x192xf32>
    %130 = arith.negf %129 : vector<2x192xf32>
    %131 = math.exp %130 : vector<2x192xf32>
    %cst_49 = arith.constant 1.000000e+00 : f32
    %132 = vector.broadcast %cst_49 : f32 to vector<2x192xf32>
    %133 = arith.addf %132, %131 : vector<2x192xf32>
    %134 = arith.divf %132, %133 : vector<2x192xf32>
    %135 = vector.extract_strided_slice %128 {offsets = [0, 192], sizes = [2, 64], strides = [1, 1]} : vector<2x256xf32> to vector<2x64xf32>
    %136 = math.tanh %135 : vector<2x64xf32>
    %137 = vector.extract_strided_slice %134 {offsets = [0, 0], sizes = [2, 64], strides = [1, 1]} : vector<2x192xf32> to vector<2x64xf32>
    %138 = vector.extract_strided_slice %134 {offsets = [0, 64], sizes = [2, 64], strides = [1, 1]} : vector<2x192xf32> to vector<2x64xf32>
    %139 = vector.extract_strided_slice %134 {offsets = [0, 128], sizes = [2, 64], strides = [1, 1]} : vector<2x192xf32> to vector<2x64xf32>
    %140 = arith.mulf %138, %119 : vector<2x64xf32>
    %141 = arith.mulf %137, %136 : vector<2x64xf32>
    %142 = arith.addf %140, %141 : vector<2x64xf32>
    %143 = math.tanh %142 : vector<2x64xf32>
    %144 = arith.mulf %139, %143 : vector<2x64xf32>
    %145 = vector.extract_strided_slice %144 {offsets = [0, 0], sizes = [2, 32], strides = [1, 1]} : vector<2x64xf32> to vector<2x32xf32>
    %c10_50 = arith.constant 10 : index
    %c0_51 = arith.constant 0 : index
    %146 = vector.load %arg10[%c10_50, %c0_51] : memref<16x64xf32, #tpu.memory_space<vmem>>, vector<2x32xf32>
    tpu.vector_store %arg10[%c10_50, %c0_51], %145 {strides = array<i32>} : memref<16x64xf32, #tpu.memory_space<vmem>>, vector<2x32xf32>,
    %147 = vector.extract_strided_slice %144 {offsets = [0, 32], sizes = [2, 32], strides = [1, 1]} : vector<2x64xf32> to vector<2x32xf32>
    %c4_52 = arith.constant 4 : index
    %c32_53 = arith.constant 32 : index
    %148 = vector.load %arg10[%c4_52, %c32_53] : memref<16x64xf32, #tpu.memory_space<vmem>>, vector<2x32xf32>
    tpu.vector_store %arg10[%c4_52, %c32_53], %147 {strides = array<i32>} : memref<16x64xf32, #tpu.memory_space<vmem>>, vector<2x32xf32>,
    %c12_54 = arith.constant 12 : index
    %c0_55 = arith.constant 0 : index
    %149 = vector.load %arg9[%c12_54, %c0_55] : memref<16x256xf32, #tpu.memory_space<vmem>>, vector<2x256xf32>
    %cst_56 = arith.constant dense<0.000000e+00> : vector<2x256xf32>
    %150 = tpu.matmul %144, %8, %cst_56 {dimension_numbers = #tpu.dot_dimension_numbers<[1], [0], [0], [1], [0, 0, 1, 1], [], []>} : vector<2x64xf32>, vector<64x256xf32>, vector<2x256xf32> -> vector<2x256xf32>
    %151 = arith.addf %149, %150 : vector<2x256xf32>
    %152 = vector.extract_strided_slice %151 {offsets = [0, 0], sizes = [2, 192], strides = [1, 1]} : vector<2x256xf32> to vector<2x192xf32>
    %153 = arith.negf %152 : vector<2x192xf32>
    %154 = math.exp %153 : vector<2x192xf32>
    %cst_57 = arith.constant 1.000000e+00 : f32
    %155 = vector.broadcast %cst_57 : f32 to vector<2x192xf32>
    %156 = arith.addf %155, %154 : vector<2x192xf32>
    %157 = arith.divf %155, %156 : vector<2x192xf32>
    %158 = vector.extract_strided_slice %151 {offsets = [0, 192], sizes = [2, 64], strides = [1, 1]} : vector<2x256xf32> to vector<2x64xf32>
    %159 = math.tanh %158 : vector<2x64xf32>
    %160 = vector.extract_strided_slice %157 {offsets = [0, 0], sizes = [2, 64], strides = [1, 1]} : vector<2x192xf32> to vector<2x64xf32>
    %161 = vector.extract_strided_slice %157 {offsets = [0, 64], sizes = [2, 64], strides = [1, 1]} : vector<2x192xf32> to vector<2x64xf32>
    %162 = vector.extract_strided_slice %157 {offsets = [0, 128], sizes = [2, 64], strides = [1, 1]} : vector<2x192xf32> to vector<2x64xf32>
    %163 = arith.mulf %161, %142 : vector<2x64xf32>
    %164 = arith.mulf %160, %159 : vector<2x64xf32>
    %165 = arith.addf %163, %164 : vector<2x64xf32>
    %166 = math.tanh %165 : vector<2x64xf32>
    %167 = arith.mulf %162, %166 : vector<2x64xf32>
    %168 = vector.extract_strided_slice %167 {offsets = [0, 0], sizes = [2, 32], strides = [1, 1]} : vector<2x64xf32> to vector<2x32xf32>
    %c12_58 = arith.constant 12 : index
    %c0_59 = arith.constant 0 : index
    %169 = vector.load %arg10[%c12_58, %c0_59] : memref<16x64xf32, #tpu.memory_space<vmem>>, vector<2x32xf32>
    tpu.vector_store %arg10[%c12_58, %c0_59], %168 {strides = array<i32>} : memref<16x64xf32, #tpu.memory_space<vmem>>, vector<2x32xf32>,
    %170 = vector.extract_strided_slice %167 {offsets = [0, 32], sizes = [2, 32], strides = [1, 1]} : vector<2x64xf32> to vector<2x32xf32>
    %c2_60 = arith.constant 2 : index
    %c32_61 = arith.constant 32 : index
    %171 = vector.load %arg10[%c2_60, %c32_61] : memref<16x64xf32, #tpu.memory_space<vmem>>, vector<2x32xf32>
    tpu.vector_store %arg10[%c2_60, %c32_61], %170 {strides = array<i32>} : memref<16x64xf32, #tpu.memory_space<vmem>>, vector<2x32xf32>,
    %c14_62 = arith.constant 14 : index
    %c0_63 = arith.constant 0 : index
    %172 = vector.load %arg9[%c14_62, %c0_63] : memref<16x256xf32, #tpu.memory_space<vmem>>, vector<2x256xf32>
    %cst_64 = arith.constant dense<0.000000e+00> : vector<2x256xf32>
    %173 = tpu.matmul %167, %8, %cst_64 {dimension_numbers = #tpu.dot_dimension_numbers<[1], [0], [0], [1], [0, 0, 1, 1], [], []>} : vector<2x64xf32>, vector<64x256xf32>, vector<2x256xf32> -> vector<2x256xf32>
    %174 = arith.addf %172, %173 : vector<2x256xf32>
    %175 = vector.extract_strided_slice %174 {offsets = [0, 0], sizes = [2, 192], strides = [1, 1]} : vector<2x256xf32> to vector<2x192xf32>
    %176 = arith.negf %175 : vector<2x192xf32>
    %177 = math.exp %176 : vector<2x192xf32>
    %cst_65 = arith.constant 1.000000e+00 : f32
    %178 = vector.broadcast %cst_65 : f32 to vector<2x192xf32>
    %179 = arith.addf %178, %177 : vector<2x192xf32>
    %180 = arith.divf %178, %179 : vector<2x192xf32>
    %181 = vector.extract_strided_slice %174 {offsets = [0, 192], sizes = [2, 64], strides = [1, 1]} : vector<2x256xf32> to vector<2x64xf32>
    %182 = math.tanh %181 : vector<2x64xf32>
    %183 = vector.extract_strided_slice %180 {offsets = [0, 0], sizes = [2, 64], strides = [1, 1]} : vector<2x192xf32> to vector<2x64xf32>
    %184 = vector.extract_strided_slice %180 {offsets = [0, 64], sizes = [2, 64], strides = [1, 1]} : vector<2x192xf32> to vector<2x64xf32>
    %185 = vector.extract_strided_slice %180 {offsets = [0, 128], sizes = [2, 64], strides = [1, 1]} : vector<2x192xf32> to vector<2x64xf32>
    %186 = arith.mulf %184, %165 : vector<2x64xf32>
    %187 = arith.mulf %183, %182 : vector<2x64xf32>
    %188 = arith.addf %186, %187 : vector<2x64xf32>
    %189 = math.tanh %188 : vector<2x64xf32>
    %190 = arith.mulf %185, %189 : vector<2x64xf32>
    %191 = vector.extract_strided_slice %190 {offsets = [0, 0], sizes = [2, 32], strides = [1, 1]} : vector<2x64xf32> to vector<2x32xf32>
    %c14_66 = arith.constant 14 : index
    %c0_67 = arith.constant 0 : index
    %192 = vector.load %arg10[%c14_66, %c0_67] : memref<16x64xf32, #tpu.memory_space<vmem>>, vector<2x32xf32>
    tpu.vector_store %arg10[%c14_66, %c0_67], %191 {strides = array<i32>} : memref<16x64xf32, #tpu.memory_space<vmem>>, vector<2x32xf32>,
    %193 = vector.extract_strided_slice %190 {offsets = [0, 32], sizes = [2, 32], strides = [1, 1]} : vector<2x64xf32> to vector<2x32xf32>
    %c0_68 = arith.constant 0 : index
    %c32_69 = arith.constant 32 : index
    %194 = vector.load %arg10[%c0_68, %c32_69] : memref<16x64xf32, #tpu.memory_space<vmem>>, vector<2x32xf32>
    tpu.vector_store %arg10[%c0_68, %c32_69], %193 {strides = array<i32>} : memref<16x64xf32, #tpu.memory_space<vmem>>, vector<2x32xf32>,
    %c0_70 = arith.constant 0 : index
    %c0_71 = arith.constant 0 : index
    %195 = vector.load %arg10[%c0_70, %c0_71] : memref<16x64xf32, #tpu.memory_space<vmem>>, vector<16x64xf32>
    %c0_72 = arith.constant 0 : index
    %c0_73 = arith.constant 0 : index
    %196 = vector.load %arg6[%c0_72, %c0_73] : memref<64x128xf32, #tpu.memory_space<vmem>>, vector<64x128xf32>
    %cst_74 = arith.constant dense<0.000000e+00> : vector<16x128xf32>
    %197 = tpu.matmul %195, %196, %cst_74 {dimension_numbers = #tpu.dot_dimension_numbers<[1], [0], [0], [1], [0, 0, 1, 1], [], []>} : vector<16x64xf32>, vector<64x128xf32>, vector<16x128xf32> -> vector<16x128xf32>
    %c0_75 = arith.constant 0 : index
    %c0_76 = arith.constant 0 : index
    %198 = vector.load %arg7[%c0_75, %c0_76] : memref<1x128xf32, #tpu.memory_space<vmem>>, vector<1x128xf32>
    %199 = vector.broadcast %198 : vector<1x128xf32> to vector<16x128xf32>
    %200 = arith.addf %197, %199 : vector<16x128xf32>
    %c0_77 = arith.constant 0 : index
    %c0_78 = arith.constant 0 : index
    %201 = vector.load %arg8[%c0_77, %c0_78] : memref<16x128xf32, #tpu.memory_space<vmem>>, vector<16x128xf32>
    tpu.vector_store %arg8[%c0_77, %c0_78], %200 {strides = array<i32>} : memref<16x128xf32, #tpu.memory_space<vmem>>, vector<16x128xf32>,
    return
  }
}

</mosaic_0001>

<llo_original>
// kernel: lstm_emissions.1
$region0: #{lstm_emissions.1}
  #allocation0 [shape = 'u32[]', space=smem, size = 0x4, offset = 0x4, fixed_abs, tag = 'smem constant byte address 0x4 - core index']
  #allocation1 [shape = 'u32[144,128]{1,0:T(1,128)}', space=vmem, size = 0x12000, scoped, tag = 'internal scratch']
  #allocation2 [shape = 'f32[16,256]{1,0:T(8,128)}', space=vmem, size = 0x4000, scoped, tag = 'scratch operand']
  #allocation3 [shape = 'f32[16,64]{1,0:T(8,128)}', space=vmem, size = 0x2000, scoped, tag = 'scratch operand']
  %s0 = inlined_call_operand.vmem [shape: f32[8,2,64], index: 0, kind: input, shape index: {}]
  %s1 = inlined_call_operand.vmem [shape: f32[64,256], index: 1, kind: input, shape index: {}]
  %s2 = inlined_call_operand.vmem [shape: f32[64,256], index: 2, kind: input, shape index: {}]
  %s3 = inlined_call_operand.vmem [shape: f32[1,256], index: 3, kind: input, shape index: {}]
  %s4 = inlined_call_operand.vmem [shape: f32[2,64], index: 4, kind: input, shape index: {}]
  %s5 = inlined_call_operand.vmem [shape: f32[2,64], index: 5, kind: input, shape index: {}]
  %s6 = inlined_call_operand.vmem [shape: f32[64,128], index: 6, kind: input, shape index: {}]
  %s7 = inlined_call_operand.vmem [shape: f32[1,128], index: 7, kind: input, shape index: {}]
  %s8 = inlined_call_operand.vmem [shape: f32[16,128], index: 8, kind: output, shape index: {}]
  %s9 = sld [smem:[#allocation0]]
  $region42: #{lstm_emissions.1} parent=0
    _
  %s11 = ssub.s32 1, %s9
  %s12 = scalar_select 0, %s11, %s9
  // Predicated region
  $region2: #{lstm_emissions.1} parent=0 // pred_check
    _
  $region3: #{lstm_emissions.1} parent=0 // pred_check_branch
    %14 = sbr.rel (0) target = $region5
  $region4: #{lstm_emissions.1} parent=0 // pred_region
    _
  $region5: #{lstm_emissions.1} parent=0 // pred_fallthru
    _
  // Predicated region
  $region6: #{lstm_emissions.1} parent=0 // pred_check
    _
  $region7: #{lstm_emissions.1} parent=0 // pred_check_branch
    %16 = sbr.rel (0) target = $region9
  $region8: #{lstm_emissions.1} parent=0 // pred_region
    _
  $region9: #{lstm_emissions.1} parent=0 // pred_fallthru
    _
  // Predicated region
  $region10: #{lstm_emissions.1} parent=0 // pred_check
    _
  $region11: #{lstm_emissions.1} parent=0 // pred_check_branch
    %18 = sbr.rel (0) target = $region13
  $region12: #{lstm_emissions.1} parent=0 // pred_region
    _
  $region13: #{lstm_emissions.1} parent=0 // pred_fallthru
    _
  // Predicated region
  $region14: #{lstm_emissions.1} parent=0 // pred_check
    _
  $region15: #{lstm_emissions.1} parent=0 // pred_check_branch
    %20 = sbr.rel (0) target = $region17
  $region16: #{lstm_emissions.1} parent=0 // pred_region
    _
  $region17: #{lstm_emissions.1} parent=0 // pred_fallthru
    _
  // Predicated region
  $region18: #{lstm_emissions.1} parent=0 // pred_check
    _
  $region19: #{lstm_emissions.1} parent=0 // pred_check_branch
    %22 = sbr.rel (0) target = $region21
  $region20: #{lstm_emissions.1} parent=0 // pred_region
    _
  $region21: #{lstm_emissions.1} parent=0 // pred_fallthru
    _
  // Predicated region
  $region22: #{lstm_emissions.1} parent=0 // pred_check
    _
  $region23: #{lstm_emissions.1} parent=0 // pred_check_branch
    %24 = sbr.rel (0) target = $region25
  $region24: #{lstm_emissions.1} parent=0 // pred_region
    _
  $region25: #{lstm_emissions.1} parent=0 // pred_fallthru
    _
  // Predicated region
  $region26: #{lstm_emissions.1} parent=0 // pred_check
    _
  $region27: #{lstm_emissions.1} parent=0 // pred_check_branch
    %26 = sbr.rel (0) target = $region29
  $region28: #{lstm_emissions.1} parent=0 // pred_region
    _
  $region29: #{lstm_emissions.1} parent=0 // pred_fallthru
    _
  // Predicated region
  $region30: #{lstm_emissions.1} parent=0 // pred_check
    _
  $region31: #{lstm_emissions.1} parent=0 // pred_check_branch
    %28 = sbr.rel (0) target = $region33
  $region32: #{lstm_emissions.1} parent=0 // pred_region
    _
  $region33: #{lstm_emissions.1} parent=0 // pred_fallthru
    _
  %v29 = vld [vmem:[%s0] sm:$0x3]
  %v30 = vld [vmem:[%s0 + $0x2] sm:$0x3]
  %v31 = vld [vmem:[%s0 + $0x4] sm:$0x3]
  %v32 = vld [vmem:[%s0 + $0x6] sm:$0x3]
  %v33 = vld [vmem:[%s0 + $0x8] sm:$0x3]
  %v34 = vld [vmem:[%s0 + $0xa] sm:$0x3]
  %v35 = vld [vmem:[%s0 + $0xc] sm:$0x3]
  %v36 = vld [vmem:[%s0 + $0xe] sm:$0x3]
  %v37 = vld [vmem:[%s1] sm:$0xff]
  %v38 = vld [vmem:[%s1 + $0x8] sm:$0xff]
  %v39 = vld [vmem:[%s1 + $0x10] sm:$0xff]
  %v40 = vld [vmem:[%s1 + $0x18] sm:$0xff]
  %v41 = vld [vmem:[%s1 + $0x20] sm:$0xff]
  %v42 = vld [vmem:[%s1 + $0x28] sm:$0xff]
  %v43 = vld [vmem:[%s1 + $0x30] sm:$0xff]
  %v44 = vld [vmem:[%s1 + $0x38] sm:$0xff]
  %v45 = vld [vmem:[%s1 + $0x40] sm:$0xff]
  %v46 = vld [vmem:[%s1 + $0x48] sm:$0xff]
  %v47 = vld [vmem:[%s1 + $0x50] sm:$0xff]
  %v48 = vld [vmem:[%s1 + $0x58] sm:$0xff]
  %v49 = vld [vmem:[%s1 + $0x60] sm:$0xff]
  %v50 = vld [vmem:[%s1 + $0x68] sm:$0xff]
  %v51 = vld [vmem:[%s1 + $0x70] sm:$0xff]
  %v52 = vld [vmem:[%s1 + $0x78] sm:$0xff]
  %v53 = vld [vmem:[%s3] sm:$0x3]
  %v55 = vlaneseq
  %v56 = vshrl.u32 %v55, 7
  %v57 = vsub.s32 0, %v56
  %v58 = vrot.slane %v53, %v57
  %v59 = vlaneseq
  %v60 = vshrl.u32 %v59, 7
  %v61 = vsub.s32 1, %v60
  %v62 = vrot.slane %v53, %v61
  %v73 = vcombine.low %v29, %v30
  %v74 = vcombine.low %v31, %v32
  %v76 = vunpack.c.l.s4 1983009808
  %v77 = vunpack.c.0.s8 %v76
  %v78 = vlaneseq
  %v79 = vshrl.u32 %v78, 7
  %v80 = vsub.s32 %v77, %v79
  %v81 = vrot.slane %v73, %v80
  %v83 = vunpack.c.l.s4 1983009808
  %v84 = vunpack.c.0.s8 %v83
  %v85 = vlaneseq
  %v86 = vshrl.u32 %v85, 7
  %v87 = vsub.s32 %v84, %v86
  %v88 = vrot.slane %v74, %v87
  %v89 = vcombine.low %v81, %v88
  %v90 = vcombine.low %v33, %v34
  %v91 = vcombine.low %v35, %v36
  %v93 = vunpack.c.l.s4 1983009808
  %v94 = vunpack.c.0.s8 %v93
  %v95 = vlaneseq
  %v96 = vshrl.u32 %v95, 7
  %v97 = vsub.s32 %v94, %v96
  %v98 = vrot.slane %v90, %v97
  %v100 = vunpack.c.l.s4 1983009808
  %v101 = vunpack.c.0.s8 %v100
  %v102 = vlaneseq
  %v103 = vshrl.u32 %v102, 7
  %v104 = vsub.s32 %v101, %v103
  %v105 = vrot.slane %v91, %v104
  %v106 = vcombine.low %v98, %v105
  %vm107 = vcmask 523264
  %v108 = vsel %vm107, %v89, 0
  %v110 = vsel %vm107, %v106, 0
  %112 = vmatprep.subr.mxu0 0.0
  %113 = vmatpush1.msra.mxu0 0.0
  %114 = vmatprep.subr.mxu0 0.0
  %115 = vmatpush1.msra.mxu0 0.0
  %116 = vmatprep.subr.mxu0 0.0
  %117 = vmatpush1.msra.mxu0 0.0
  %118 = vmatprep.subr.mxu0 0.0
  %119 = vmatpush1.msra.mxu0 0.0
  %120 = vmatprep.subr.mxu0 0.0
  %121 = vmatpush1.msra.mxu0 0.0
  %122 = vmatprep.subr.mxu0 0.0
  %123 = vmatpush1.msra.mxu0 0.0
  %124 = vmatprep.subr.mxu0 0.0
  %125 = vmatpush1.msra.mxu0 0.0
  %126 = vmatprep.subr.mxu0 0.0
  %127 = vmatpush1.msra.mxu0 0.0
  %128 = vmatprep.subr.mxu0 %v52
  %129 = vmatpush1.msra.mxu0 %v51
  %130 = vmatprep.subr.mxu0 %v50
  %131 = vmatpush1.msra.mxu0 %v49
  %132 = vmatprep.subr.mxu0 %v48
  %133 = vmatpush1.msra.mxu0 %v47
  %134 = vmatprep.subr.mxu0 %v46
  %135 = vmatpush1.msra.mxu0 %v45
  %136 = vmatprep.subr.mxu0 %v44
  %137 = vmatpush1.msra.mxu0 %v43
  %138 = vmatprep.subr.mxu0 %v42
  %139 = vmatpush1.msra.mxu0 %v41
  %140 = vmatprep.subr.mxu0 %v40
  %141 = vmatpush1.msra.mxu0 %v39
  %142 = vmatprep.subr.mxu0 %v38
  %143 = vmatpush1.msra.mxu0 %v37
  %144 = vmatprep.subr.mxu0 0.0
  %145 = vmatpush2.msra.mxu0 0.0
  %146 = vmatprep.subr.mxu0 0.0
  %147 = vmatpush2.msra.mxu0 0.0
  %148 = vmatprep.subr.mxu0 0.0
  %149 = vmatpush2.msra.mxu0 0.0
  %150 = vmatprep.subr.mxu0 0.0
  %151 = vmatpush2.msra.mxu0 0.0
  %152 = vmatprep.subr.mxu0 0.0
  %153 = vmatpush2.msra.mxu0 0.0
  %154 = vmatprep.subr.mxu0 0.0
  %155 = vmatpush2.msra.mxu0 0.0
  %156 = vmatprep.subr.mxu0 0.0
  %157 = vmatpush2.msra.mxu0 0.0
  %158 = vmatprep.subr.mxu0 0.0
  %159 = vmatpush2.msra.mxu0 0.0
  %160 = vmatprep.subr.mxu0 0.0
  %161 = vmatpush2.msra.mxu0 0.0
  %162 = vmatprep.subr.mxu0 0.0
  %163 = vmatpush2.msra.mxu0 0.0
  %164 = vmatprep.subr.mxu0 0.0
  %165 = vmatpush2.msra.mxu0 0.0
  %166 = vmatprep.subr.mxu0 0.0
  %167 = vmatpush2.msra.mxu0 0.0
  %168 = vmatprep.subr.mxu0 0.0
  %169 = vmatpush2.msra.mxu0 0.0
  %170 = vmatprep.subr.mxu0 0.0
  %171 = vmatpush2.msra.mxu0 0.0
  %172 = vmatprep.subr.mxu0 0.0
  %173 = vmatpush2.msra.mxu0 0.0
  %174 = vmatprep.subr.mxu0 0.0
  %175 = vmatpush2.msra.mxu0 0.0
  %176 = vmatprep.mubr.f32.mxu0 0.0
  %177 = vmatmul.mubr.f32.gmra.mxu0 %v108
  %v178 = vpop.f32.mrf.mxu0
  %v179 = vadd.f32 %v58, %v178
  %v180 = vpop.f32.mrf.mxu0
  %v181 = vadd.f32 %v62, %v180
  %182 = vmatprep.mubr.f32.mxu0 0.0
  %183 = vmatmul.mubr.f32.gmra.mxu0 %v110
  %v184 = vpop.f32.mrf.mxu0
  %v185 = vadd.f32 %v58, %v184
  %v186 = vpop.f32.mrf.mxu0
  %v187 = vadd.f32 %v62, %v186
  %188 = vdwg.mxu0
  %189 = vst [vmem:[#allocation2] sm:$0xff] %v179
  %190 = vst [vmem:[#allocation2 + $0x8] sm:$0xff] %v181
  %191 = vst [vmem:[#allocation2 + $0x10] sm:$0xff] %v185
  %192 = vst [vmem:[#allocation2 + $0x18] sm:$0xff] %v187
  %v193 = vld [vmem:[%s2] sm:$0xff]
  %v194 = vld [vmem:[%s2 + $0x8] sm:$0xff]
  %v195 = vld [vmem:[%s2 + $0x10] sm:$0xff]
  %v196 = vld [vmem:[%s2 + $0x18] sm:$0xff]
  %v197 = vld [vmem:[%s2 + $0x20] sm:$0xff]
  %v198 = vld [vmem:[%s2 + $0x28] sm:$0xff]
  %v199 = vld [vmem:[%s2 + $0x30] sm:$0xff]
  %v200 = vld [vmem:[%s2 + $0x38] sm:$0xff]
  %v201 = vld [vmem:[%s2 + $0x40] sm:$0xff]
  %v202 = vld [vmem:[%s2 + $0x48] sm:$0xff]
  %v203 = vld [vmem:[%s2 + $0x50] sm:$0xff]
  %v204 = vld [vmem:[%s2 + $0x58] sm:$0xff]
  %v205 = vld [vmem:[%s2 + $0x60] sm:$0xff]
  %v206 = vld [vmem:[%s2 + $0x68] sm:$0xff]
  %v207 = vld [vmem:[%s2 + $0x70] sm:$0xff]
  %v208 = vld [vmem:[%s2 + $0x78] sm:$0xff]
  %v209 = vld [vmem:[%s4] sm:$0x3]
  %v210 = vld [vmem:[%s5] sm:$0x3]
  %v211 = vld [vmem:[#allocation2] sm:$0x3]
  %v212 = vld [vmem:[#allocation2 + $0x8] sm:$0x3]
  %v214 = vsel %vm107, %v209, 0
  %216 = vmatprep.subr.mxu0 0.0
  %217 = vmatpush1.msra.mxu0 0.0
  %218 = vmatprep.subr.mxu0 0.0
  %219 = vmatpush1.msra.mxu0 0.0
  %220 = vmatprep.subr.mxu0 0.0
  %221 = vmatpush1.msra.mxu0 0.0
  %222 = vmatprep.subr.mxu0 0.0
  %223 = vmatpush1.msra.mxu0 0.0
  %224 = vmatprep.subr.mxu0 0.0
  %225 = vmatpush1.msra.mxu0 0.0
  %226 = vmatprep.subr.mxu0 0.0
  %227 = vmatpush1.msra.mxu0 0.0
  %228 = vmatprep.subr.mxu0 0.0
  %229 = vmatpush1.msra.mxu0 0.0
  %230 = vmatprep.subr.mxu0 0.0
  %231 = vmatpush1.msra.mxu0 0.0
  %232 = vmatprep.subr.mxu0 %v208
  %233 = vmatpush1.msra.mxu0 %v207
  %234 = vmatprep.subr.mxu0 %v206
  %235 = vmatpush1.msra.mxu0 %v205
  %236 = vmatprep.subr.mxu0 %v204
  %237 = vmatpush1.msra.mxu0 %v203
  %238 = vmatprep.subr.mxu0 %v202
  %239 = vmatpush1.msra.mxu0 %v201
  %240 = vmatprep.subr.mxu0 %v200
  %241 = vmatpush1.msra.mxu0 %v199
  %242 = vmatprep.subr.mxu0 %v198
  %243 = vmatpush1.msra.mxu0 %v197
  %244 = vmatprep.subr.mxu0 %v196
  %245 = vmatpush1.msra.mxu0 %v195
  %246 = vmatprep.subr.mxu0 %v194
  %247 = vmatpush1.msra.mxu0 %v193
  %248 = vmatprep.subr.mxu0 0.0
  %249 = vmatpush2.msra.mxu0 0.0
  %250 = vmatprep.subr.mxu0 0.0
  %251 = vmatpush2.msra.mxu0 0.0
  %252 = vmatprep.subr.mxu0 0.0
  %253 = vmatpush2.msra.mxu0 0.0
  %254 = vmatprep.subr.mxu0 0.0
  %255 = vmatpush2.msra.mxu0 0.0
  %256 = vmatprep.subr.mxu0 0.0
  %257 = vmatpush2.msra.mxu0 0.0
  %258 = vmatprep.subr.mxu0 0.0
  %259 = vmatpush2.msra.mxu0 0.0
  %260 = vmatprep.subr.mxu0 0.0
  %261 = vmatpush2.msra.mxu0 0.0
  %262 = vmatprep.subr.mxu0 0.0
  %263 = vmatpush2.msra.mxu0 0.0
  %264 = vmatprep.subr.mxu0 0.0
  %265 = vmatpush2.msra.mxu0 0.0
  %266 = vmatprep.subr.mxu0 0.0
  %267 = vmatpush2.msra.mxu0 0.0
  %268 = vmatprep.subr.mxu0 0.0
  %269 = vmatpush2.msra.mxu0 0.0
  %270 = vmatprep.subr.mxu0 0.0
  %271 = vmatpush2.msra.mxu0 0.0
  %272 = vmatprep.subr.mxu0 0.0
  %273 = vmatpush2.msra.mxu0 0.0
  %274 = vmatprep.subr.mxu0 0.0
  %275 = vmatpush2.msra.mxu0 0.0
  %276 = vmatprep.subr.mxu0 0.0
  %277 = vmatpush2.msra.mxu0 0.0
  %278 = vmatprep.subr.mxu0 0.0
  %279 = vmatpush2.msra.mxu0 0.0
  %280 = vmatprep.mubr.f32.mxu0 0.0
  %281 = vmatmul.mubr.f32.gmra.mxu0 %v214
  %v282 = vpop.f32.mrf.mxu0
  %v283 = vadd.f32 0.0, %v282
  %v284 = vpop.f32.mrf.mxu0
  %v285 = vadd.f32 0.0, %v284
  %286 = vdwg.mxu0
  %v287 = vadd.f32 %v211, %v283
  %v288 = vadd.f32 %v212, %v285
  %v289 = vxor.u32 %v287, 2147483648
  %v290 = vxor.u32 %v288, 2147483648
  %v291 = vmul.f32 %v289, 1.442695
  %v292 = vpow.pop %v291
  %v293 = vmul.f32 %v290, 1.442695
  %v294 = vpow.pop %v293
  %v295 = vadd.f32 %v292, 1.0
  %v296 = vadd.f32 %v294, 1.0
  %v297 = vrcp.pop %v295
  %v298 = vmul.f32 1.0, %v297
  %v299 = vrcp.pop %v296
  %v300 = vmul.f32 1.0, %v299
  %v301 = vtanh.pop %v288
  %303 = vrot.lane.b32.xlu0 %v210, 64
  %v304 = vpop.permute.xlu0 %303
  %v306 = vmul.f32 %v298, %v304
  %308 = vrot.lane.b32.xlu0 %v301, 64
  %v309 = vpop.permute.xlu0 %308
  %v311 = vmul.f32 %v298, %v309
  %313 = vrot.lane.b32.xlu0 %v311, 64
  %v314 = vpop.permute.xlu0 %313
  %v316 = vadd.f32 %v306, %v314
  %v317 = vtanh.pop %v316
  %319 = vrot.lane.b32.xlu0 %v317, 64
  %v320 = vpop.permute.xlu0 %319
  %v322 = vmul.f32 %v300, %v320
  %vm323 = vcmask 254976
  %324 = vst.msk [vmem:[#allocation3] sm:$0x3] %vm323, %v322
  %vm325 = vcmask 517376
  %326 = vst.msk [vmem:[#allocation3 + $0xe] sm:$0x3] %vm325, %v322
  %v327 = vld [vmem:[#allocation2] sm:$0xc]
  %v328 = vld [vmem:[#allocation2 + $0x8] sm:$0xc]
  %v330 = vsel %vm107, %v322, 0
  %332 = vmatprep.subr.mxu0 0.0
  %333 = vmatpush1.msra.mxu0 0.0
  %334 = vmatprep.subr.mxu0 0.0
  %335 = vmatpush1.msra.mxu0 0.0
  %336 = vmatprep.subr.mxu0 0.0
  %337 = vmatpush1.msra.mxu0 0.0
  %338 = vmatprep.subr.mxu0 0.0
  %339 = vmatpush1.msra.mxu0 0.0
  %340 = vmatprep.subr.mxu0 0.0
  %341 = vmatpush1.msra.mxu0 0.0
  %342 = vmatprep.subr.mxu0 0.0
  %343 = vmatpush1.msra.mxu0 0.0
  %344 = vmatprep.subr.mxu0 0.0
  %345 = vmatpush1.msra.mxu0 0.0
  %346 = vmatprep.subr.mxu0 0.0
  %347 = vmatpush1.msra.mxu0 0.0
  %348 = vmatprep.subr.mxu0 %v208
  %349 = vmatpush1.msra.mxu0 %v207
  %350 = vmatprep.subr.mxu0 %v206
  %351 = vmatpush1.msra.mxu0 %v205
  %352 = vmatprep.subr.mxu0 %v204
  %353 = vmatpush1.msra.mxu0 %v203
  %354 = vmatprep.subr.mxu0 %v202
  %355 = vmatpush1.msra.mxu0 %v201
  %356 = vmatprep.subr.mxu0 %v200
  %357 = vmatpush1.msra.mxu0 %v199
  %358 = vmatprep.subr.mxu0 %v198
  %359 = vmatpush1.msra.mxu0 %v197
  %360 = vmatprep.subr.mxu0 %v196
  %361 = vmatpush1.msra.mxu0 %v195
  %362 = vmatprep.subr.mxu0 %v194
  %363 = vmatpush1.msra.mxu0 %v193
  %364 = vmatprep.subr.mxu0 0.0
  %365 = vmatpush2.msra.mxu0 0.0
  %366 = vmatprep.subr.mxu0 0.0
  %367 = vmatpush2.msra.mxu0 0.0
  %368 = vmatprep.subr.mxu0 0.0
  %369 = vmatpush2.msra.mxu0 0.0
  %370 = vmatprep.subr.mxu0 0.0
  %371 = vmatpush2.msra.mxu0 0.0
  %372 = vmatprep.subr.mxu0 0.0
  %373 = vmatpush2.msra.mxu0 0.0
  %374 = vmatprep.subr.mxu0 0.0
  %375 = vmatpush2.msra.mxu0 0.0
  %376 = vmatprep.subr.mxu0 0.0
  %377 = vmatpush2.msra.mxu0 0.0
  %378 = vmatprep.subr.mxu0 0.0
  %379 = vmatpush2.msra.mxu0 0.0
  %380 = vmatprep.subr.mxu0 0.0
  %381 = vmatpush2.msra.mxu0 0.0
  %382 = vmatprep.subr.mxu0 0.0
  %383 = vmatpush2.msra.mxu0 0.0
  %384 = vmatprep.subr.mxu0 0.0
  %385 = vmatpush2.msra.mxu0 0.0
  %386 = vmatprep.subr.mxu0 0.0
  %387 = vmatpush2.msra.mxu0 0.0
  %388 = vmatprep.subr.mxu0 0.0
  %389 = vmatpush2.msra.mxu0 0.0
  %390 = vmatprep.subr.mxu0 0.0
  %391 = vmatpush2.msra.mxu0 0.0
  %392 = vmatprep.subr.mxu0 0.0
  %393 = vmatpush2.msra.mxu0 0.0
  %394 = vmatprep.subr.mxu0 0.0
  %395 = vmatpush2.msra.mxu0 0.0
  %396 = vmatprep.mubr.f32.mxu0 0.0
  %397 = vmatmul.mubr.f32.gmra.mxu0 %v330
  %v398 = vpop.f32.mrf.mxu0
  %v399 = vadd.f32 0.0, %v398
  %v400 = vpop.f32.mrf.mxu0
  %v401 = vadd.f32 0.0, %v400
  %402 = vdwg.mxu0
  %v405 = vrot.slane %v399, 6
  %v406 = vrot.slane %v401, 6
  %v409 = vadd.f32 %v327, %v405
  %v410 = vadd.f32 %v328, %v406
  %v411 = vxor.u32 %v409, 2147483648
  %v412 = vxor.u32 %v410, 2147483648
  %v413 = vmul.f32 %v411, 1.442695
  %v414 = vpow.pop %v413
  %v415 = vmul.f32 %v412, 1.442695
  %v416 = vpow.pop %v415
  %v417 = vadd.f32 %v414, 1.0
  %v418 = vadd.f32 %v416, 1.0
  %v419 = vrcp.pop %v417
  %v420 = vmul.f32 1.0, %v419
  %v421 = vrcp.pop %v418
  %v422 = vmul.f32 1.0, %v421
  %v423 = vtanh.pop %v410
  %v425 = vrot.slane %v316, 6
  %v427 = vmul.f32 %v420, %v425
  %429 = vrot.lane.b32.xlu0 %v423, 64
  %v430 = vpop.permute.xlu0 %429
  %v432 = vmul.f32 %v420, %v430
  %434 = vrot.lane.b32.xlu0 %v432, 64
  %v435 = vpop.permute.xlu0 %434
  %v437 = vadd.f32 %v427, %v435
  %v438 = vtanh.pop %v437
  %440 = vrot.lane.b32.xlu0 %v438, 64
  %v441 = vpop.permute.xlu0 %440
  %v443 = vmul.f32 %v422, %v441
  %vm444 = vcmask 257026
  %445 = vst.msk [vmem:[#allocation3] sm:$0xc] %vm444, %v443
  %vm446 = vcmask 519426
  %447 = vst.msk [vmem:[#allocation3 + $0xa] sm:$0xc] %vm446, %v443
  %v448 = vld [vmem:[#allocation2] sm:$0x30]
  %v449 = vld [vmem:[#allocation2 + $0x8] sm:$0x30]
  %v451 = vrot.slane %v443, 2
  %v452 = vsel %vm107, %v451, 0
  %454 = vmatprep.subr.mxu0 0.0
  %455 = vmatpush1.msra.mxu0 0.0
  %456 = vmatprep.subr.mxu0 0.0
  %457 = vmatpush1.msra.mxu0 0.0
  %458 = vmatprep.subr.mxu0 0.0
  %459 = vmatpush1.msra.mxu0 0.0
  %460 = vmatprep.subr.mxu0 0.0
  %461 = vmatpush1.msra.mxu0 0.0
  %462 = vmatprep.subr.mxu0 0.0
  %463 = vmatpush1.msra.mxu0 0.0
  %464 = vmatprep.subr.mxu0 0.0
  %465 = vmatpush1.msra.mxu0 0.0
  %466 = vmatprep.subr.mxu0 0.0
  %467 = vmatpush1.msra.mxu0 0.0
  %468 = vmatprep.subr.mxu0 0.0
  %469 = vmatpush1.msra.mxu0 0.0
  %470 = vmatprep.subr.mxu0 %v208
  %471 = vmatpush1.msra.mxu0 %v207
  %472 = vmatprep.subr.mxu0 %v206
  %473 = vmatpush1.msra.mxu0 %v205
  %474 = vmatprep.subr.mxu0 %v204
  %475 = vmatpush1.msra.mxu0 %v203
  %476 = vmatprep.subr.mxu0 %v202
  %477 = vmatpush1.msra.mxu0 %v201
  %478 = vmatprep.subr.mxu0 %v200
  %479 = vmatpush1.msra.mxu0 %v199
  %480 = vmatprep.subr.mxu0 %v198
  %481 = vmatpush1.msra.mxu0 %v197
  %482 = vmatprep.subr.mxu0 %v196
  %483 = vmatpush1.msra.mxu0 %v195
  %484 = vmatprep.subr.mxu0 %v194
  %485 = vmatpush1.msra.mxu0 %v193
  %486 = vmatprep.subr.mxu0 0.0
  %487 = vmatpush2.msra.mxu0 0.0
  %488 = vmatprep.subr.mxu0 0.0
  %489 = vmatpush2.msra.mxu0 0.0
  %490 = vmatprep.subr.mxu0 0.0
  %491 = vmatpush2.msra.mxu0 0.0
  %492 = vmatprep.subr.mxu0 0.0
  %493 = vmatpush2.msra.mxu0 0.0
  %494 = vmatprep.subr.mxu0 0.0
  %495 = vmatpush2.msra.mxu0 0.0
  %496 = vmatprep.subr.mxu0 0.0
  %497 = vmatpush2.msra.mxu0 0.0
  %498 = vmatprep.subr.mxu0 0.0
  %499 = vmatpush2.msra.mxu0 0.0
  %500 = vmatprep.subr.mxu0 0.0
  %501 = vmatpush2.msra.mxu0 0.0
  %502 = vmatprep.subr.mxu0 0.0
  %503 = vmatpush2.msra.mxu0 0.0
  %504 = vmatprep.subr.mxu0 0.0
  %505 = vmatpush2.msra.mxu0 0.0
  %506 = vmatprep.subr.mxu0 0.0
  %507 = vmatpush2.msra.mxu0 0.0
  %508 = vmatprep.subr.mxu0 0.0
  %509 = vmatpush2.msra.mxu0 0.0
  %510 = vmatprep.subr.mxu0 0.0
  %511 = vmatpush2.msra.mxu0 0.0
  %512 = vmatprep.subr.mxu0 0.0
  %513 = vmatpush2.msra.mxu0 0.0
  %514 = vmatprep.subr.mxu0 0.0
  %515 = vmatpush2.msra.mxu0 0.0
  %516 = vmatprep.subr.mxu0 0.0
  %517 = vmatpush2.msra.mxu0 0.0
  %518 = vmatprep.mubr.f32.mxu0 0.0
  %519 = vmatmul.mubr.f32.gmra.mxu0 %v452
  %v520 = vpop.f32.mrf.mxu0
  %v521 = vadd.f32 0.0, %v520
  %v522 = vpop.f32.mrf.mxu0
  %v523 = vadd.f32 0.0, %v522
  %524 = vdwg.mxu0
  %v527 = vrot.slane %v521, 4
  %v528 = vrot.slane %v523, 4
  %v531 = vadd.f32 %v448, %v527
  %v532 = vadd.f32 %v449, %v528
  %v533 = vxor.u32 %v531, 2147483648
  %v534 = vxor.u32 %v532, 2147483648
  %v535 = vmul.f32 %v533, 1.442695
  %v536 = vpow.pop %v535
  %v537 = vmul.f32 %v534, 1.442695
  %v538 = vpow.pop %v537
  %v539 = vadd.f32 %v536, 1.0
  %v540 = vadd.f32 %v538, 1.0
  %v541 = vrcp.pop %v539
  %v542 = vmul.f32 1.0, %v541
  %v543 = vrcp.pop %v540
  %v544 = vmul.f32 1.0, %v543
  %v545 = vtanh.pop %v532
  %v547 = vrot.slane %v437, 6
  %v549 = vmul.f32 %v542, %v547
  %551 = vrot.lane.b32.xlu0 %v545, 64
  %v552 = vpop.permute.xlu0 %551
  %v554 = vmul.f32 %v542, %v552
  %556 = vrot.lane.b32.xlu0 %v554, 64
  %v557 = vpop.permute.xlu0 %556
  %v559 = vadd.f32 %v549, %v557
  %v560 = vtanh.pop %v559
  %562 = vrot.lane.b32.xlu0 %v560, 64
  %v563 = vpop.permute.xlu0 %562
  %v565 = vmul.f32 %v544, %v563
  %vm566 = vcmask 259076
  %567 = vst.msk [vmem:[#allocation3] sm:$0x30] %vm566, %v565
  %vm568 = vcmask 521476
  %569 = vst.msk [vmem:[#allocation3 + $0x6] sm:$0x30] %vm568, %v565
  %v570 = vld [vmem:[#allocation2] sm:$0xc0]
  %v571 = vld [vmem:[#allocation2 + $0x8] sm:$0xc0]
  %v573 = vrot.slane %v565, 4
  %v574 = vsel %vm107, %v573, 0
  %576 = vmatprep.subr.mxu0 0.0
  %577 = vmatpush1.msra.mxu0 0.0
  %578 = vmatprep.subr.mxu0 0.0
  %579 = vmatpush1.msra.mxu0 0.0
  %580 = vmatprep.subr.mxu0 0.0
  %581 = vmatpush1.msra.mxu0 0.0
  %582 = vmatprep.subr.mxu0 0.0
  %583 = vmatpush1.msra.mxu0 0.0
  %584 = vmatprep.subr.mxu0 0.0
  %585 = vmatpush1.msra.mxu0 0.0
  %586 = vmatprep.subr.mxu0 0.0
  %587 = vmatpush1.msra.mxu0 0.0
  %588 = vmatprep.subr.mxu0 0.0
  %589 = vmatpush1.msra.mxu0 0.0
  %590 = vmatprep.subr.mxu0 0.0
  %591 = vmatpush1.msra.mxu0 0.0
  %592 = vmatprep.subr.mxu0 %v208
  %593 = vmatpush1.msra.mxu0 %v207
  %594 = vmatprep.subr.mxu0 %v206
  %595 = vmatpush1.msra.mxu0 %v205
  %596 = vmatprep.subr.mxu0 %v204
  %597 = vmatpush1.msra.mxu0 %v203
  %598 = vmatprep.subr.mxu0 %v202
  %599 = vmatpush1.msra.mxu0 %v201
  %600 = vmatprep.subr.mxu0 %v200
  %601 = vmatpush1.msra.mxu0 %v199
  %602 = vmatprep.subr.mxu0 %v198
  %603 = vmatpush1.msra.mxu0 %v197
  %604 = vmatprep.subr.mxu0 %v196
  %605 = vmatpush1.msra.mxu0 %v195
  %606 = vmatprep.subr.mxu0 %v194
  %607 = vmatpush1.msra.mxu0 %v193
  %608 = vmatprep.subr.mxu0 0.0
  %609 = vmatpush2.msra.mxu0 0.0
  %610 = vmatprep.subr.mxu0 0.0
  %611 = vmatpush2.msra.mxu0 0.0
  %612 = vmatprep.subr.mxu0 0.0
  %613 = vmatpush2.msra.mxu0 0.0
  %614 = vmatprep.subr.mxu0 0.0
  %615 = vmatpush2.msra.mxu0 0.0
  %616 = vmatprep.subr.mxu0 0.0
  %617 = vmatpush2.msra.mxu0 0.0
  %618 = vmatprep.subr.mxu0 0.0
  %619 = vmatpush2.msra.mxu0 0.0
  %620 = vmatprep.subr.mxu0 0.0
  %621 = vmatpush2.msra.mxu0 0.0
  %622 = vmatprep.subr.mxu0 0.0
  %623 = vmatpush2.msra.mxu0 0.0
  %624 = vmatprep.subr.mxu0 0.0
  %625 = vmatpush2.msra.mxu0 0.0
  %626 = vmatprep.subr.mxu0 0.0
  %627 = vmatpush2.msra.mxu0 0.0
  %628 = vmatprep.subr.mxu0 0.0
  %629 = vmatpush2.msra.mxu0 0.0
  %630 = vmatprep.subr.mxu0 0.0
  %631 = vmatpush2.msra.mxu0 0.0
  %632 = vmatprep.subr.mxu0 0.0
  %633 = vmatpush2.msra.mxu0 0.0
  %634 = vmatprep.subr.mxu0 0.0
  %635 = vmatpush2.msra.mxu0 0.0
  %636 = vmatprep.subr.mxu0 0.0
  %637 = vmatpush2.msra.mxu0 0.0
  %638 = vmatprep.subr.mxu0 0.0
  %639 = vmatpush2.msra.mxu0 0.0
  %640 = vmatprep.mubr.f32.mxu0 0.0
  %641 = vmatmul.mubr.f32.gmra.mxu0 %v574
  %v642 = vpop.f32.mrf.mxu0
  %v643 = vadd.f32 0.0, %v642
  %v644 = vpop.f32.mrf.mxu0
  %v645 = vadd.f32 0.0, %v644
  %646 = vdwg.mxu0
  %v649 = vrot.slane %v643, 2
  %v650 = vrot.slane %v645, 2
  %v653 = vadd.f32 %v570, %v649
  %v654 = vadd.f32 %v571, %v650
  %v655 = vxor.u32 %v653, 2147483648
  %v656 = vxor.u32 %v654, 2147483648
  %v657 = vmul.f32 %v655, 1.442695
  %v658 = vpow.pop %v657
  %v659 = vmul.f32 %v656, 1.442695
  %v660 = vpow.pop %v659
  %v661 = vadd.f32 %v658, 1.0
  %v662 = vadd.f32 %v660, 1.0
  %v663 = vrcp.pop %v661
  %v664 = vmul.f32 1.0, %v663
  %v665 = vrcp.pop %v662
  %v666 = vmul.f32 1.0, %v665
  %v667 = vtanh.pop %v654
  %v669 = vrot.slane %v559, 6
  %v671 = vmul.f32 %v664, %v669
  %673 = vrot.lane.b32.xlu0 %v667, 64
  %v674 = vpop.permute.xlu0 %673
  %v676 = vmul.f32 %v664, %v674
  %678 = vrot.lane.b32.xlu0 %v676, 64
  %v679 = vpop.permute.xlu0 %678
  %v681 = vadd.f32 %v671, %v679
  %v682 = vtanh.pop %v681
  %684 = vrot.lane.b32.xlu0 %v682, 64
  %v685 = vpop.permute.xlu0 %684
  %v687 = vmul.f32 %v666, %v685
  %vm688 = vcmask 261126
  %689 = vst.msk [vmem:[#allocation3] sm:$0xc0] %vm688, %v687
  %vm690 = vcmask 523526
  %691 = vst.msk [vmem:[#allocation3 + $0x2] sm:$0xc0] %vm690, %v687
  %v692 = vld [vmem:[#allocation2 + $0x10] sm:$0x3]
  %v693 = vld [vmem:[#allocation2 + $0x18] sm:$0x3]
  %v695 = vrot.slane %v687, 6
  %v696 = vsel %vm107, %v695, 0
  %698 = vmatprep.subr.mxu0 0.0
  %699 = vmatpush1.msra.mxu0 0.0
  %700 = vmatprep.subr.mxu0 0.0
  %701 = vmatpush1.msra.mxu0 0.0
  %702 = vmatprep.subr.mxu0 0.0
  %703 = vmatpush1.msra.mxu0 0.0
  %704 = vmatprep.subr.mxu0 0.0
  %705 = vmatpush1.msra.mxu0 0.0
  %706 = vmatprep.subr.mxu0 0.0
  %707 = vmatpush1.msra.mxu0 0.0
  %708 = vmatprep.subr.mxu0 0.0
  %709 = vmatpush1.msra.mxu0 0.0
  %710 = vmatprep.subr.mxu0 0.0
  %711 = vmatpush1.msra.mxu0 0.0
  %712 = vmatprep.subr.mxu0 0.0
  %713 = vmatpush1.msra.mxu0 0.0
  %714 = vmatprep.subr.mxu0 %v208
  %715 = vmatpush1.msra.mxu0 %v207
  %716 = vmatprep.subr.mxu0 %v206
  %717 = vmatpush1.msra.mxu0 %v205
  %718 = vmatprep.subr.mxu0 %v204
  %719 = vmatpush1.msra.mxu0 %v203
  %720 = vmatprep.subr.mxu0 %v202
  %721 = vmatpush1.msra.mxu0 %v201
  %722 = vmatprep.subr.mxu0 %v200
  %723 = vmatpush1.msra.mxu0 %v199
  %724 = vmatprep.subr.mxu0 %v198
  %725 = vmatpush1.msra.mxu0 %v197
  %726 = vmatprep.subr.mxu0 %v196
  %727 = vmatpush1.msra.mxu0 %v195
  %728 = vmatprep.subr.mxu0 %v194
  %729 = vmatpush1.msra.mxu0 %v193
  %730 = vmatprep.subr.mxu0 0.0
  %731 = vmatpush2.msra.mxu0 0.0
  %732 = vmatprep.subr.mxu0 0.0
  %733 = vmatpush2.msra.mxu0 0.0
  %734 = vmatprep.subr.mxu0 0.0
  %735 = vmatpush2.msra.mxu0 0.0
  %736 = vmatprep.subr.mxu0 0.0
  %737 = vmatpush2.msra.mxu0 0.0
  %738 = vmatprep.subr.mxu0 0.0
  %739 = vmatpush2.msra.mxu0 0.0
  %740 = vmatprep.subr.mxu0 0.0
  %741 = vmatpush2.msra.mxu0 0.0
  %742 = vmatprep.subr.mxu0 0.0
  %743 = vmatpush2.msra.mxu0 0.0
  %744 = vmatprep.subr.mxu0 0.0
  %745 = vmatpush2.msra.mxu0 0.0
  %746 = vmatprep.subr.mxu0 0.0
  %747 = vmatpush2.msra.mxu0 0.0
  %748 = vmatprep.subr.mxu0 0.0
  %749 = vmatpush2.msra.mxu0 0.0
  %750 = vmatprep.subr.mxu0 0.0
  %751 = vmatpush2.msra.mxu0 0.0
  %752 = vmatprep.subr.mxu0 0.0
  %753 = vmatpush2.msra.mxu0 0.0
  %754 = vmatprep.subr.mxu0 0.0
  %755 = vmatpush2.msra.mxu0 0.0
  %756 = vmatprep.subr.mxu0 0.0
  %757 = vmatpush2.msra.mxu0 0.0
  %758 = vmatprep.subr.mxu0 0.0
  %759 = vmatpush2.msra.mxu0 0.0
  %760 = vmatprep.subr.mxu0 0.0
  %761 = vmatpush2.msra.mxu0 0.0
  %762 = vmatprep.mubr.f32.mxu0 0.0
  %763 = vmatmul.mubr.f32.gmra.mxu0 %v696
  %v764 = vpop.f32.mrf.mxu0
  %v765 = vadd.f32 0.0, %v764
  %v766 = vpop.f32.mrf.mxu0
  %v767 = vadd.f32 0.0, %v766
  %768 = vdwg.mxu0
  %v769 = vadd.f32 %v692, %v765
  %v770 = vadd.f32 %v693, %v767
  %v771 = vxor.u32 %v769, 2147483648
  %v772 = vxor.u32 %v770, 2147483648
  %v773 = vmul.f32 %v771, 1.442695
  %v774 = vpow.pop %v773
  %v775 = vmul.f32 %v772, 1.442695
  %v776 = vpow.pop %v775
  %v777 = vadd.f32 %v774, 1.0
  %v778 = vadd.f32 %v776, 1.0
  %v779 = vrcp.pop %v777
  %v780 = vmul.f32 1.0, %v779
  %v781 = vrcp.pop %v778
  %v782 = vmul.f32 1.0, %v781
  %v783 = vtanh.pop %v770
  %v785 = vrot.slane %v681, 6
  %v787 = vmul.f32 %v780, %v785
  %789 = vrot.lane.b32.xlu0 %v783, 64
  %v790 = vpop.permute.xlu0 %789
  %v792 = vmul.f32 %v780, %v790
  %794 = vrot.lane.b32.xlu0 %v792, 64
  %v795 = vpop.permute.xlu0 %794
  %v797 = vadd.f32 %v787, %v795
  %v798 = vtanh.pop %v797
  %800 = vrot.lane.b32.xlu0 %v798, 64
  %v801 = vpop.permute.xlu0 %800
  %v803 = vmul.f32 %v782, %v801
  %804 = vst.msk [vmem:[#allocation3 + $0x8] sm:$0x3] %vm323, %v803
  %805 = vst.msk [vmem:[#allocation3 + $0x6] sm:$0x3] %vm325, %v803
  %v806 = vld [vmem:[#allocation2 + $0x10] sm:$0xc]
  %v807 = vld [vmem:[#allocation2 + $0x18] sm:$0xc]
  %v809 = vsel %vm107, %v803, 0
  %811 = vmatprep.subr.mxu0 0.0
  %812 = vmatpush1.msra.mxu0 0.0
  %813 = vmatprep.subr.mxu0 0.0
  %814 = vmatpush1.msra.mxu0 0.0
  %815 = vmatprep.subr.mxu0 0.0
  %816 = vmatpush1.msra.mxu0 0.0
  %817 = vmatprep.subr.mxu0 0.0
  %818 = vmatpush1.msra.mxu0 0.0
  %819 = vmatprep.subr.mxu0 0.0
  %820 = vmatpush1.msra.mxu0 0.0
  %821 = vmatprep.subr.mxu0 0.0
  %822 = vmatpush1.msra.mxu0 0.0
  %823 = vmatprep.subr.mxu0 0.0
  %824 = vmatpush1.msra.mxu0 0.0
  %825 = vmatprep.subr.mxu0 0.0
  %826 = vmatpush1.msra.mxu0 0.0
  %827 = vmatprep.subr.mxu0 %v208
  %828 = vmatpush1.msra.mxu0 %v207
  %829 = vmatprep.subr.mxu0 %v206
  %830 = vmatpush1.msra.mxu0 %v205
  %831 = vmatprep.subr.mxu0 %v204
  %832 = vmatpush1.msra.mxu0 %v203
  %833 = vmatprep.subr.mxu0 %v202
  %834 = vmatpush1.msra.mxu0 %v201
  %835 = vmatprep.subr.mxu0 %v200
  %836 = vmatpush1.msra.mxu0 %v199
  %837 = vmatprep.subr.mxu0 %v198
  %838 = vmatpush1.msra.mxu0 %v197
  %839 = vmatprep.subr.mxu0 %v196
  %840 = vmatpush1.msra.mxu0 %v195
  %841 = vmatprep.subr.mxu0 %v194
  %842 = vmatpush1.msra.mxu0 %v193
  %843 = vmatprep.subr.mxu0 0.0
  %844 = vmatpush2.msra.mxu0 0.0
  %845 = vmatprep.subr.mxu0 0.0
  %846 = vmatpush2.msra.mxu0 0.0
  %847 = vmatprep.subr.mxu0 0.0
  %848 = vmatpush2.msra.mxu0 0.0
  %849 = vmatprep.subr.mxu0 0.0
  %850 = vmatpush2.msra.mxu0 0.0
  %851 = vmatprep.subr.mxu0 0.0
  %852 = vmatpush2.msra.mxu0 0.0
  %853 = vmatprep.subr.mxu0 0.0
  %854 = vmatpush2.msra.mxu0 0.0
  %855 = vmatprep.subr.mxu0 0.0
  %856 = vmatpush2.msra.mxu0 0.0
  %857 = vmatprep.subr.mxu0 0.0
  %858 = vmatpush2.msra.mxu0 0.0
  %859 = vmatprep.subr.mxu0 0.0
  %860 = vmatpush2.msra.mxu0 0.0
  %861 = vmatprep.subr.mxu0 0.0
  %862 = vmatpush2.msra.mxu0 0.0
  %863 = vmatprep.subr.mxu0 0.0
  %864 = vmatpush2.msra.mxu0 0.0
  %865 = vmatprep.subr.mxu0 0.0
  %866 = vmatpush2.msra.mxu0 0.0
  %867 = vmatprep.subr.mxu0 0.0
  %868 = vmatpush2.msra.mxu0 0.0
  %869 = vmatprep.subr.mxu0 0.0
  %870 = vmatpush2.msra.mxu0 0.0
  %871 = vmatprep.subr.mxu0 0.0
  %872 = vmatpush2.msra.mxu0 0.0
  %873 = vmatprep.subr.mxu0 0.0
  %874 = vmatpush2.msra.mxu0 0.0
  %875 = vmatprep.mubr.f32.mxu0 0.0
  %876 = vmatmul.mubr.f32.gmra.mxu0 %v809
  %v877 = vpop.f32.mrf.mxu0
  %v878 = vadd.f32 0.0, %v877
  %v879 = vpop.f32.mrf.mxu0
  %v880 = vadd.f32 0.0, %v879
  %881 = vdwg.mxu0
  %v884 = vrot.slane %v878, 6
  %v885 = vrot.slane %v880, 6
  %v888 = vadd.f32 %v806, %v884
  %v889 = vadd.f32 %v807, %v885
  %v890 = vxor.u32 %v888, 2147483648
  %v891 = vxor.u32 %v889, 2147483648
  %v892 = vmul.f32 %v890, 1.442695
  %v893 = vpow.pop %v892
  %v894 = vmul.f32 %v891, 1.442695
  %v895 = vpow.pop %v894
  %v896 = vadd.f32 %v893, 1.0
  %v897 = vadd.f32 %v895, 1.0
  %v898 = vrcp.pop %v896
  %v899 = vmul.f32 1.0, %v898
  %v900 = vrcp.pop %v897
  %v901 = vmul.f32 1.0, %v900
  %v902 = vtanh.pop %v889
  %v904 = vrot.slane %v797, 6
  %v906 = vmul.f32 %v899, %v904
  %908 = vrot.lane.b32.xlu0 %v902, 64
  %v909 = vpop.permute.xlu0 %908
  %v911 = vmul.f32 %v899, %v909
  %913 = vrot.lane.b32.xlu0 %v911, 64
  %v914 = vpop.permute.xlu0 %913
  %v916 = vadd.f32 %v906, %v914
  %v917 = vtanh.pop %v916
  %919 = vrot.lane.b32.xlu0 %v917, 64
  %v920 = vpop.permute.xlu0 %919
  %v922 = vmul.f32 %v901, %v920
  %923 = vst.msk [vmem:[#allocation3 + $0x8] sm:$0xc] %vm444, %v922
  %924 = vst.msk [vmem:[#allocation3 + $0x2] sm:$0xc] %vm446, %v922
  %v925 = vld [vmem:[#allocation2 + $0x10] sm:$0x30]
  %v926 = vld [vmem:[#allocation2 + $0x18] sm:$0x30]
  %v928 = vrot.slane %v922, 2
  %v929 = vsel %vm107, %v928, 0
  %931 = vmatprep.subr.mxu0 0.0
  %932 = vmatpush1.msra.mxu0 0.0
  %933 = vmatprep.subr.mxu0 0.0
  %934 = vmatpush1.msra.mxu0 0.0
  %935 = vmatprep.subr.mxu0 0.0
  %936 = vmatpush1.msra.mxu0 0.0
  %937 = vmatprep.subr.mxu0 0.0
  %938 = vmatpush1.msra.mxu0 0.0
  %939 = vmatprep.subr.mxu0 0.0
  %940 = vmatpush1.msra.mxu0 0.0
  %941 = vmatprep.subr.mxu0 0.0
  %942 = vmatpush1.msra.mxu0 0.0
  %943 = vmatprep.subr.mxu0 0.0
  %944 = vmatpush1.msra.mxu0 0.0
  %945 = vmatprep.subr.mxu0 0.0
  %946 = vmatpush1.msra.mxu0 0.0
  %947 = vmatprep.subr.mxu0 %v208
  %948 = vmatpush1.msra.mxu0 %v207
  %949 = vmatprep.subr.mxu0 %v206
  %950 = vmatpush1.msra.mxu0 %v205
  %951 = vmatprep.subr.mxu0 %v204
  %952 = vmatpush1.msra.mxu0 %v203
  %953 = vmatprep.subr.mxu0 %v202
  %954 = vmatpush1.msra.mxu0 %v201
  %955 = vmatprep.subr.mxu0 %v200
  %956 = vmatpush1.msra.mxu0 %v199
  %957 = vmatprep.subr.mxu0 %v198
  %958 = vmatpush1.msra.mxu0 %v197
  %959 = vmatprep.subr.mxu0 %v196
  %960 = vmatpush1.msra.mxu0 %v195
  %961 = vmatprep.subr.mxu0 %v194
  %962 = vmatpush1.msra.mxu0 %v193
  %963 = vmatprep.subr.mxu0 0.0
  %964 = vmatpush2.msra.mxu0 0.0
  %965 = vmatprep.subr.mxu0 0.0
  %966 = vmatpush2.msra.mxu0 0.0
  %967 = vmatprep.subr.mxu0 0.0
  %968 = vmatpush2.msra.mxu0 0.0
  %969 = vmatprep.subr.mxu0 0.0
  %970 = vmatpush2.msra.mxu0 0.0
  %971 = vmatprep.subr.mxu0 0.0
  %972 = vmatpush2.msra.mxu0 0.0
  %973 = vmatprep.subr.mxu0 0.0
  %974 = vmatpush2.msra.mxu0 0.0
  %975 = vmatprep.subr.mxu0 0.0
  %976 = vmatpush2.msra.mxu0 0.0
  %977 = vmatprep.subr.mxu0 0.0
  %978 = vmatpush2.msra.mxu0 0.0
  %979 = vmatprep.subr.mxu0 0.0
  %980 = vmatpush2.msra.mxu0 0.0
  %981 = vmatprep.subr.mxu0 0.0
  %982 = vmatpush2.msra.mxu0 0.0
  %983 = vmatprep.subr.mxu0 0.0
  %984 = vmatpush2.msra.mxu0 0.0
  %985 = vmatprep.subr.mxu0 0.0
  %986 = vmatpush2.msra.mxu0 0.0
  %987 = vmatprep.subr.mxu0 0.0
  %988 = vmatpush2.msra.mxu0 0.0
  %989 = vmatprep.subr.mxu0 0.0
  %990 = vmatpush2.msra.mxu0 0.0
  %991 = vmatprep.subr.mxu0 0.0
  %992 = vmatpush2.msra.mxu0 0.0
  %993 = vmatprep.subr.mxu0 0.0
  %994 = vmatpush2.msra.mxu0 0.0
  %995 = vmatprep.mubr.f32.mxu0 0.0
  %996 = vmatmul.mubr.f32.gmra.mxu0 %v929
  %v997 = vpop.f32.mrf.mxu0
  %v998 = vadd.f32 0.0, %v997
  %v999 = vpop.f32.mrf.mxu0
  %v1000 = vadd.f32 0.0, %v999
  %1001 = vdwg.mxu0
  %v1004 = vrot.slane %v998, 4
  %v1005 = vrot.slane %v1000, 4
  %v1008 = vadd.f32 %v925, %v1004
  %v1009 = vadd.f32 %v926, %v1005
  %v1010 = vxor.u32 %v1008, 2147483648
  %v1011 = vxor.u32 %v1009, 2147483648
  %v1012 = vmul.f32 %v1010, 1.442695
  %v1013 = vpow.pop %v1012
  %v1014 = vmul.f32 %v1011, 1.442695
  %v1015 = vpow.pop %v1014
  %v1016 = vadd.f32 %v1013, 1.0
  %v1017 = vadd.f32 %v1015, 1.0
  %v1018 = vrcp.pop %v1016
  %v1019 = vmul.f32 1.0, %v1018
  %v1020 = vrcp.pop %v1017
  %v1021 = vmul.f32 1.0, %v1020
  %v1022 = vtanh.pop %v1009
  %v1024 = vrot.slane %v916, 6
  %v1026 = vmul.f32 %v1019, %v1024
  %1028 = vrot.lane.b32.xlu0 %v1022, 64
  %v1029 = vpop.permute.xlu0 %1028
  %v1031 = vmul.f32 %v1019, %v1029
  %1033 = vrot.lane.b32.xlu0 %v1031, 64
  %v1034 = vpop.permute.xlu0 %1033
  %v1036 = vadd.f32 %v1026, %v1034
  %v1037 = vtanh.pop %v1036
  %1039 = vrot.lane.b32.xlu0 %v1037, 64
  %v1040 = vpop.permute.xlu0 %1039
  %v1042 = vmul.f32 %v1021, %v1040
  %1043 = vst.msk [vmem:[#allocation3 + $0x8] sm:$0x30] %vm566, %v1042
  %1044 = vst.msk [vmem:[#allocation3 - $0x2] sm:$0x30] %vm568, %v1042
  %v1045 = vld [vmem:[#allocation2 + $0x10] sm:$0xc0]
  %v1046 = vld [vmem:[#allocation2 + $0x18] sm:$0xc0]
  %v1048 = vrot.slane %v1042, 4
  %v1049 = vsel %vm107, %v1048, 0
  %1051 = vmatprep.subr.mxu0 0.0
  %1052 = vmatpush1.msra.mxu0 0.0
  %1053 = vmatprep.subr.mxu0 0.0
  %1054 = vmatpush1.msra.mxu0 0.0
  %1055 = vmatprep.subr.mxu0 0.0
  %1056 = vmatpush1.msra.mxu0 0.0
  %1057 = vmatprep.subr.mxu0 0.0
  %1058 = vmatpush1.msra.mxu0 0.0
  %1059 = vmatprep.subr.mxu0 0.0
  %1060 = vmatpush1.msra.mxu0 0.0
  %1061 = vmatprep.subr.mxu0 0.0
  %1062 = vmatpush1.msra.mxu0 0.0
  %1063 = vmatprep.subr.mxu0 0.0
  %1064 = vmatpush1.msra.mxu0 0.0
  %1065 = vmatprep.subr.mxu0 0.0
  %1066 = vmatpush1.msra.mxu0 0.0
  %1067 = vmatprep.subr.mxu0 %v208
  %1068 = vmatpush1.msra.mxu0 %v207
  %1069 = vmatprep.subr.mxu0 %v206
  %1070 = vmatpush1.msra.mxu0 %v205
  %1071 = vmatprep.subr.mxu0 %v204
  %1072 = vmatpush1.msra.mxu0 %v203
  %1073 = vmatprep.subr.mxu0 %v202
  %1074 = vmatpush1.msra.mxu0 %v201
  %1075 = vmatprep.subr.mxu0 %v200
  %1076 = vmatpush1.msra.mxu0 %v199
  %1077 = vmatprep.subr.mxu0 %v198
  %1078 = vmatpush1.msra.mxu0 %v197
  %1079 = vmatprep.subr.mxu0 %v196
  %1080 = vmatpush1.msra.mxu0 %v195
  %1081 = vmatprep.subr.mxu0 %v194
  %1082 = vmatpush1.msra.mxu0 %v193
  %1083 = vmatprep.subr.mxu0 0.0
  %1084 = vmatpush2.msra.mxu0 0.0
  %1085 = vmatprep.subr.mxu0 0.0
  %1086 = vmatpush2.msra.mxu0 0.0
  %1087 = vmatprep.subr.mxu0 0.0
  %1088 = vmatpush2.msra.mxu0 0.0
  %1089 = vmatprep.subr.mxu0 0.0
  %1090 = vmatpush2.msra.mxu0 0.0
  %1091 = vmatprep.subr.mxu0 0.0
  %1092 = vmatpush2.msra.mxu0 0.0
  %1093 = vmatprep.subr.mxu0 0.0
  %1094 = vmatpush2.msra.mxu0 0.0
  %1095 = vmatprep.subr.mxu0 0.0
  %1096 = vmatpush2.msra.mxu0 0.0
  %1097 = vmatprep.subr.mxu0 0.0
  %1098 = vmatpush2.msra.mxu0 0.0
  %1099 = vmatprep.subr.mxu0 0.0
  %1100 = vmatpush2.msra.mxu0 0.0
  %1101 = vmatprep.subr.mxu0 0.0
  %1102 = vmatpush2.msra.mxu0 0.0
  %1103 = vmatprep.subr.mxu0 0.0
  %1104 = vmatpush2.msra.mxu0 0.0
  %1105 = vmatprep.subr.mxu0 0.0
  %1106 = vmatpush2.msra.mxu0 0.0
  %1107 = vmatprep.subr.mxu0 0.0
  %1108 = vmatpush2.msra.mxu0 0.0
  %1109 = vmatprep.subr.mxu0 0.0
  %1110 = vmatpush2.msra.mxu0 0.0
  %1111 = vmatprep.subr.mxu0 0.0
  %1112 = vmatpush2.msra.mxu0 0.0
  %1113 = vmatprep.subr.mxu0 0.0
  %1114 = vmatpush2.msra.mxu0 0.0
  %1115 = vmatprep.mubr.f32.mxu0 0.0
  %1116 = vmatmul.mubr.f32.gmra.mxu0 %v1049
  %v1117 = vpop.f32.mrf.mxu0
  %v1118 = vadd.f32 0.0, %v1117
  %v1119 = vpop.f32.mrf.mxu0
  %v1120 = vadd.f32 0.0, %v1119
  %1121 = vdwg.mxu0
  %v1124 = vrot.slane %v1118, 2
  %v1125 = vrot.slane %v1120, 2
  %v1128 = vadd.f32 %v1045, %v1124
  %v1129 = vadd.f32 %v1046, %v1125
  %v1130 = vxor.u32 %v1128, 2147483648
  %v1131 = vxor.u32 %v1129, 2147483648
  %v1132 = vmul.f32 %v1130, 1.442695
  %v1133 = vpow.pop %v1132
  %v1134 = vmul.f32 %v1131, 1.442695
  %v1135 = vpow.pop %v1134
  %v1136 = vadd.f32 %v1133, 1.0
  %v1137 = vadd.f32 %v1135, 1.0
  %v1138 = vrcp.pop %v1136
  %v1139 = vmul.f32 1.0, %v1138
  %v1140 = vrcp.pop %v1137
  %v1141 = vmul.f32 1.0, %v1140
  %v1142 = vtanh.pop %v1129
  %v1144 = vrot.slane %v1036, 6
  %v1146 = vmul.f32 %v1139, %v1144
  %1148 = vrot.lane.b32.xlu0 %v1142, 64
  %v1149 = vpop.permute.xlu0 %1148
  %v1151 = vmul.f32 %v1139, %v1149
  %1153 = vrot.lane.b32.xlu0 %v1151, 64
  %v1154 = vpop.permute.xlu0 %1153
  %v1156 = vadd.f32 %v1146, %v1154
  %v1157 = vtanh.pop %v1156
  %1159 = vrot.lane.b32.xlu0 %v1157, 64
  %v1160 = vpop.permute.xlu0 %1159
  %v1162 = vmul.f32 %v1141, %v1160
  %1163 = vst.msk [vmem:[#allocation3 + $0x8] sm:$0xc0] %vm688, %v1162
  %1164 = vst.msk [vmem:[#allocation3 - $0x6] sm:$0xc0] %vm690, %v1162
  %v1165 = vld [vmem:[#allocation3] sm:$0xff]
  %v1166 = vld [vmem:[#allocation3 + $0x8] sm:$0xff]
  %v1167 = vld [vmem:[%s6] sm:$0xff]
  %v1168 = vld [vmem:[%s6 + $0x8] sm:$0xff]
  %v1169 = vld [vmem:[%s6 + $0x10] sm:$0xff]
  %v1170 = vld [vmem:[%s6 + $0x18] sm:$0xff]
  %v1171 = vld [vmem:[%s6 + $0x20] sm:$0xff]
  %v1172 = vld [vmem:[%s6 + $0x28] sm:$0xff]
  %v1173 = vld [vmem:[%s6 + $0x30] sm:$0xff]
  %v1174 = vld [vmem:[%s6 + $0x38] sm:$0xff]
  %v1175 = vld [vmem:[%s7] sm:$0x1]
  %v1177 = vlaneseq
  %v1178 = vshrl.u32 %v1177, 7
  %v1179 = vsub.s32 0, %v1178
  %v1180 = vrot.slane %v1175, %v1179
  %v1183 = vsel %vm107, %v1165, 0
  %v1186 = vsel %vm107, %v1166, 0
  %1188 = vmatprep.subr.mxu0 0.0
  %1189 = vmatpush1.msra.mxu0 0.0
  %1190 = vmatprep.subr.mxu0 0.0
  %1191 = vmatpush1.msra.mxu0 0.0
  %1192 = vmatprep.subr.mxu0 0.0
  %1193 = vmatpush1.msra.mxu0 0.0
  %1194 = vmatprep.subr.mxu0 0.0
  %1195 = vmatpush1.msra.mxu0 0.0
  %1196 = vmatprep.subr.mxu0 0.0
  %1197 = vmatpush1.msra.mxu0 0.0
  %1198 = vmatprep.subr.mxu0 0.0
  %1199 = vmatpush1.msra.mxu0 0.0
  %1200 = vmatprep.subr.mxu0 0.0
  %1201 = vmatpush1.msra.mxu0 0.0
  %1202 = vmatprep.subr.mxu0 0.0
  %1203 = vmatpush1.msra.mxu0 0.0
  %1204 = vmatprep.subr.mxu0 0.0
  %1205 = vmatpush1.msra.mxu0 %v1174
  %1206 = vmatprep.subr.mxu0 0.0
  %1207 = vmatpush1.msra.mxu0 %v1173
  %1208 = vmatprep.subr.mxu0 0.0
  %1209 = vmatpush1.msra.mxu0 %v1172
  %1210 = vmatprep.subr.mxu0 0.0
  %1211 = vmatpush1.msra.mxu0 %v1171
  %1212 = vmatprep.subr.mxu0 0.0
  %1213 = vmatpush1.msra.mxu0 %v1170
  %1214 = vmatprep.subr.mxu0 0.0
  %1215 = vmatpush1.msra.mxu0 %v1169
  %1216 = vmatprep.subr.mxu0 0.0
  %1217 = vmatpush1.msra.mxu0 %v1168
  %1218 = vmatprep.subr.mxu0 0.0
  %1219 = vmatpush1.msra.mxu0 %v1167
  %1220 = vmatprep.subr.mxu0 0.0
  %1221 = vmatpush2.msra.mxu0 0.0
  %1222 = vmatprep.subr.mxu0 0.0
  %1223 = vmatpush2.msra.mxu0 0.0
  %1224 = vmatprep.subr.mxu0 0.0
  %1225 = vmatpush2.msra.mxu0 0.0
  %1226 = vmatprep.subr.mxu0 0.0
  %1227 = vmatpush2.msra.mxu0 0.0
  %1228 = vmatprep.subr.mxu0 0.0
  %1229 = vmatpush2.msra.mxu0 0.0
  %1230 = vmatprep.subr.mxu0 0.0
  %1231 = vmatpush2.msra.mxu0 0.0
  %1232 = vmatprep.subr.mxu0 0.0
  %1233 = vmatpush2.msra.mxu0 0.0
  %1234 = vmatprep.subr.mxu0 0.0
  %1235 = vmatpush2.msra.mxu0 0.0
  %1236 = vmatprep.subr.mxu0 0.0
  %1237 = vmatpush2.msra.mxu0 0.0
  %1238 = vmatprep.subr.mxu0 0.0
  %1239 = vmatpush2.msra.mxu0 0.0
  %1240 = vmatprep.subr.mxu0 0.0
  %1241 = vmatpush2.msra.mxu0 0.0
  %1242 = vmatprep.subr.mxu0 0.0
  %1243 = vmatpush2.msra.mxu0 0.0
  %1244 = vmatprep.subr.mxu0 0.0
  %1245 = vmatpush2.msra.mxu0 0.0
  %1246 = vmatprep.subr.mxu0 0.0
  %1247 = vmatpush2.msra.mxu0 0.0
  %1248 = vmatprep.subr.mxu0 0.0
  %1249 = vmatpush2.msra.mxu0 0.0
  %1250 = vmatprep.subr.mxu0 0.0
  %1251 = vmatpush2.msra.mxu0 0.0
  %1252 = vmatprep.mubr.f32.mxu0 0.0
  %1253 = vmatmul.mubr.f32.gmra.mxu0 %v1183
  %v1254 = vpop.f32.mrf.mxu0
  %v1255 = vadd.f32 %v1180, %v1254
  %v1256 = vpop.f32.mrf.mxu0
  %1257 = vmatprep.mubr.f32.mxu0 0.0
  %1258 = vmatmul.mubr.f32.gmra.mxu0 %v1186
  %v1259 = vpop.f32.mrf.mxu0
  %v1260 = vadd.f32 %v1180, %v1259
  %v1261 = vpop.f32.mrf.mxu0
  %1262 = vdwg.mxu0
  %1263 = vst [vmem:[%s8] sm:$0xff] %v1255
  %1264 = vst [vmem:[%s8 + $0x8] sm:$0xff] %v1260
  // Predicated region
  $region34: #{lstm_emissions.1} parent=0 // pred_check
    _
  $region35: #{lstm_emissions.1} parent=0 // pred_check_branch
    %1266 = sbr.rel (0) target = $region37
  $region36: #{lstm_emissions.1} parent=0 // pred_region
    _
  $region37: #{lstm_emissions.1} parent=0 // pred_fallthru
    _
  // Predicated region
  $region38: #{lstm_emissions.1} parent=0 // pred_check
    _
  $region39: #{lstm_emissions.1} parent=0 // pred_check_branch
    %1268 = sbr.rel (0) target = $region41
  $region40: #{lstm_emissions.1} parent=0 // pred_region
    _
  $region41: #{lstm_emissions.1} parent=0 // pred_fallthru
    _

</llo_original>
